<compile_context>
chip_gen: v7x
topology: tpu7x:2x2x1
jax: 0.10.0
libtpu: 0.0.40
codegen_flags: <defaults>
</compile_context>

<pallas_src>
import functools

import jax
import jax.numpy as jnp
from jax.experimental import pallas as pl
from jax.experimental.pallas import tpu as pltpu


# ------------------------- in-kernel helpers -------------------------------

def _elu(x):
    # F.elu with alpha=1.0; clamp before exp so the not-taken branch of the
    # where never overflows.
    return jnp.where(x > 0, x, jnp.exp(jnp.minimum(x, 0.0)) - 1.0)


# ------------------------------ kernel --------------------------------------

def encoder_kernel(
    x_me_ref, x_cr_ref, x_mr_ref, x_sc_ref, x_cov_ref,   # [TB, d_v] f32 views
    w1s_ref,       # [5, P, H] bf16 stacked per-view first-layer row-slabs
    w2_ref,        # [H, H]    bf16 block-diagonal hidden weights (+ I for cov)
    wlin_ref,      # [H, H]    bf16 merge layer (original w_lin0)
    b_pack_ref,    # [3, H]    f32 rows: b1, b2, b_lin0
    w_heads_ref,   # [H, 2L]   bf16 concat(w_mu, w_std)
    b_heads_ref,   # [1, 2L]   f32 concat(b_mu, b_std)
    out_ref,       # [TB, 2L]  f32 concat(mu, log_std)
    *,
    view_dims,        # static: per-view input widths
    n_view_hidden,    # static: lanes that get the second ELU (E_me+E_cr+E_mr+E_sc)
):
    f32, bf16 = jnp.float32, jnp.bfloat16
    b_all = b_pack_ref[...]
    b1, b2, b_lin = b_all[0:1, :], b_all[1:2, :], b_all[2:3, :]

    # ----- per-view first layers.  dot(concat(x_v), W_blockdiag) is computed
    # as a sum of per-view row-slab dots (mathematically identical), avoiding
    # assembly of concat(x) via unaligned masked lane stores.
    view_refs = (x_me_ref, x_cr_ref, x_mr_ref, x_sc_ref, x_cov_ref)
    pre1 = None
    for v, (x_ref, d) in enumerate(zip(view_refs, view_dims)):
        contrib = jnp.dot(x_ref[...].astype(bf16), w1s_ref[v, :d, :],
                          preferred_element_type=f32)
        pre1 = contrib if pre1 is None else pre1 + contrib
    h1 = _elu(pre1 + b1)

    # ----- per-view hidden layers (block-diagonal; identity block for cov).
    # The cov lanes must pass through un-activated (PyTorch applies only one
    # ELU to h_cov), so the second ELU is masked to the first n_view_hidden
    # lanes using a cheap (1, H) iota row broadcast by jnp.where.
    pre2 = jnp.dot(h1.astype(bf16), w2_ref[...], preferred_element_type=f32) + b2
    lane = jax.lax.broadcasted_iota(jnp.int32, (1, pre2.shape[1]), 1)
    h2 = jnp.where(lane < n_view_hidden, _elu(pre2), pre2)

    # ----- merge layer (n_hidden == 1, the module default).
    h = _elu(jnp.dot(h2.astype(bf16), wlin_ref[...],
                     preferred_element_type=f32) + b_lin)

    # ----- fused mu / log_std heads: one dot, one fused store.
    out_ref[...] = (
        jnp.dot(h.astype(bf16), w_heads_ref[...], preferred_element_type=f32)
        + b_heads_ref[...]
    )


# ------------------------- one-time param fusion -----------------------------

def prepare_encoder_params(params, latent_dim):
    """Build the fused bf16 weight slabs ONCE.  Do NOT call per forward pass."""
    (w_exp, b_exp, w_exph, b_exph,
     w_corr, b_corr, w_corrh, b_corrh,
     w_morph, b_morph, w_morphh, b_morphh,
     w_sp, b_sp, w_sph, b_sph,
     w_cov, b_cov,
     w_lin0, b_lin0,
     w_mu, b_mu, w_std, b_std) = params

    f32, bf16 = jnp.float32, jnp.bfloat16
    first_ws = (w_exp, w_corr, w_morph, w_sp, w_cov)
    hidden_ws = (w_exph, w_corrh, w_morphh, w_sph)

    view_dims = tuple(int(w.shape[0]) for w in first_ws)
    view_outs = tuple(int(w.shape[1]) for w in first_ws)
    H = sum(view_outs)                                   # hidden_dim
    n_view_hidden = sum(int(w.shape[1]) for w in hidden_ws)
    E_cov = int(w_cov.shape[1])
    L = int(latent_dim)

    # Stacked per-view first-layer weights: slab v is [P, H]; rows :d_v hold
    # W_v placed at that view's output-lane offset, zero elsewhere.  Summing
    # dot(x_v, slab_v) over views == dot(concat(x_v), blockdiag(W_v)).
    P = max(8, -(-max(view_dims) // 8) * 8)
    w1s = jnp.zeros((len(first_ws), P, H), f32)
    col = 0
    for v, w in enumerate(first_ws):
        d, e = int(w.shape[0]), int(w.shape[1])
        w1s = w1s.at[v, :d, col:col + e].set(w.astype(f32))
        col += e
    b1 = jnp.concatenate([b_exp, b_corr, b_morph, b_sp, b_cov], axis=1).astype(f32)

    # Block-diagonal hidden weights; identity block + zero bias for the cov
    # branch (its second ELU is masked off inside the kernel).
    w2 = jnp.zeros((H, H), f32)
    col = 0
    for w in hidden_ws:
        e = int(w.shape[1])
        w2 = w2.at[col:col + e, col:col + e].set(w.astype(f32))
        col += e
    w2 = w2.at[col:, col:].set(jnp.eye(E_cov, dtype=f32))
    b2 = jnp.concatenate(
        [b_exph, b_corrh, b_morphh, b_sph, jnp.zeros((1, E_cov), f32)], axis=1)

    b_pack = jnp.concatenate([b1, b2, b_lin0.astype(f32)], axis=0)       # [3, H]
    w_heads = jnp.concatenate([w_mu, w_std], axis=1)                     # [H, 2L]
    b_heads = jnp.concatenate([b_mu, b_std], axis=1).astype(f32)         # [1, 2L]

    # TODO(synk): n_hidden > 1 merge stacks are not supported here; the module
    # default n_hidden == 1 is assumed (only w_lin0 / b_lin0 are consumed).
    return {
        "w1s": w1s.astype(bf16),
        "w2": w2.astype(bf16),
        "wlin": w_lin0.astype(bf16),
        "b_pack": b_pack,
        "w_heads": w_heads.astype(bf16),
        "b_heads": b_heads,
        "view_dims": view_dims,
        "n_view_hidden": int(n_view_hidden),
        "hidden_dim": int(H),
        "latent_dim": L,
    }


# ------------------------------ wrapper --------------------------------------

def _pick_batch_tile(B, cap=4096):
    """Return (tile, padded_B).  tile is a multiple of 8 (or == B for tiny B),
    capped at `cap`, and yields >= 2 grid steps whenever B >= 16 so both v7x
    TensorCores get work.  Awkward B is handled by zero padding."""
    if B < 16:
        return B, B
    n_steps = max(2, -(-B // cap))
    per_step = -(-B // n_steps)
    tb = min(-(-per_step // 8) * 8, cap)
    padded = -(-B // tb) * tb
    return tb, padded


def encoder_hmivae_forward(x_mean, x_correlations, x_morphology,
                           x_spatial_context, cov_list, prepared,
                           batch_tile_cap=4096):
    f32 = jnp.float32
    B = int(x_mean.shape[0])
    L = prepared["latent_dim"]
    view_dims = prepared["view_dims"]

    if cov_list.shape[0] <= 1:
        # TODO(synk): the module's raw-covariate pass-through branch
        # (cov_list.shape[0] <= 1) is a data-dependent Python branch; only the
        # standard batched path is implemented.
        raise NotImplementedError("cov_list.shape[0] <= 1 path not implemented")

    views = [x_mean, x_correlations, x_morphology, x_spatial_context, cov_list]
    views = [v.astype(f32) for v in views]
    for v, d in zip(views, view_dims):
        assert v.shape == (B, d), (v.shape, (B, d))

    TB, B_pad = _pick_batch_tile(B, batch_tile_cap)
    if B_pad != B:
        views = [jnp.pad(v, ((0, B_pad - B), (0, 0))) for v in views]

    weights = (prepared["w1s"], prepared["w2"], prepared["wlin"],
               prepared["b_pack"], prepared["w_heads"], prepared["b_heads"])

    in_specs = [pl.BlockSpec((TB, d), lambda i: (i, 0)) for d in view_dims]
    # Weight / bias blocks: index never changes, so Pallas fetches them once
    # and keeps them resident across the whole batch grid.
    in_specs += [pl.BlockSpec(tuple(w.shape), lambda i, nd=w.ndim: (0,) * nd)
                 for w in weights]
    out_specs = pl.BlockSpec((TB, 2 * L), lambda i: (i, 0))

    kernel = functools.partial(encoder_kernel,
                               view_dims=view_dims,
                               n_view_hidden=prepared["n_view_hidden"])

    out = pl.pallas_call(
        kernel,
        out_shape=jax.ShapeDtypeStruct((B_pad, 2 * L), f32),
        grid_spec=pltpu.PrefetchScalarGridSpec(
            num_scalar_prefetch=0,
            grid=(B_pad // TB,),
            in_specs=in_specs,
            out_specs=out_specs,
        ),
        compiler_params=pltpu.CompilerParams(
            dimension_semantics=("parallel",),
            vmem_limit_bytes=48 * 1024 * 1024,   # covers the 4096-row tile on v7x (64 MiB VMEM)
        ),
    )(*views, *weights)

    out = out[:B]
    return out[:, :L], out[:, L:]


# ------------------------- reference (plain JAX) -----------------------------

def encoder_ref(x_mean, x_corr, x_morph, x_spcont, cov_list, params):
    (w_exp, b_exp, w_exph, b_exph,
     w_corr, b_corr, w_corrh, b_corrh,
     w_morph, b_morph, w_morphh, b_morphh,
     w_sp, b_sp, w_sph, b_sph,
     w_cov, b_cov,
     w_lin0, b_lin0,
     w_mu, b_mu, w_std, b_std) = params
    h_me2 = _elu(_elu(x_mean @ w_exp + b_exp) @ w_exph + b_exph)
    h_cr2 = _elu(_elu(x_corr @ w_corr + b_corr) @ w_corrh + b_corrh)
    h_mr2 = _elu(_elu(x_morph @ w_morph + b_morph) @ w_morphh + b_morphh)
    h_sc2 = _elu(_elu(x_spcont @ w_sp + b_sp) @ w_sph + b_sph)
    h_cov = _elu(cov_list @ w_cov + b_cov)
    h = jnp.concatenate([h_me2, h_cr2, h_mr2, h_sc2, h_cov], axis=1)
    h = _elu(h @ w_lin0 + b_lin0)
    return h @ w_mu + b_mu, h @ w_std + b_std


# --------------------------------- main --------------------------------------

if __name__ == "__main__":
    # Model hyper-parameters (small, consistent with the module __init__).
    input_exp_dim, input_corr_dim = 10, 15
    input_morph_dim, input_spcont_dim = 4, 10
    E_me = E_cr = E_mr = E_sc = 8
    E_cov = 10
    n_covariates = 3
    latent_dim = 16
    hidden_dim = E_me + E_cr + E_mr + E_sc + E_cov  # 42

    key = jax.random.PRNGKey(0)
    ks = list(jax.random.split(key, 16))
    nk = iter(ks)

    def init_lin(in_d, out_d):
        kw, kb = jax.random.split(next(nk))
        bound = 1.0 / jnp.sqrt(jnp.float32(in_d))
        w = jax.random.uniform(kw, (in_d, out_d), jnp.float32, -bound, bound)
        b = jax.random.uniform(kb, (1, out_d), jnp.float32, -bound, bound)
        return w, b

    w_exp, b_exp = init_lin(input_exp_dim, E_me)
    w_exph, b_exph = init_lin(E_me, E_me)
    w_corr, b_corr = init_lin(input_corr_dim, E_cr)
    w_corrh, b_corrh = init_lin(E_cr, E_cr)
    w_morph, b_morph = init_lin(input_morph_dim, E_mr)
    w_morphh, b_morphh = init_lin(E_mr, E_mr)
    w_sp, b_sp = init_lin(input_spcont_dim, E_sc)
    w_sph, b_sph = init_lin(E_sc, E_sc)
    w_cov, b_cov = init_lin(n_covariates, E_cov)
    w_lin0, b_lin0 = init_lin(hidden_dim, hidden_dim)
    w_mu, b_mu = init_lin(hidden_dim, latent_dim)
    w_std, b_std = init_lin(hidden_dim, latent_dim)

    params = (w_exp, b_exp, w_exph, b_exph,
              w_corr, b_corr, w_corrh, b_corrh,
              w_morph, b_morph, w_morphh, b_morphh,
              w_sp, b_sp, w_sph, b_sph,
              w_cov, b_cov,
              w_lin0, b_lin0,
              w_mu, b_mu, w_std, b_std)

    # Fuse the weights ONCE (not per forward call).
    prepared = prepare_encoder_params(params, latent_dim)

    # Two small batch sizes: one even (no padding) and one awkward (exercises
    # the zero-padding path and the >=2-step grid).
    for B in (64, 20):
        kx = list(jax.random.split(next(nk), 5))
        x_mean = jax.random.normal(kx[0], (B, input_exp_dim), jnp.float32)
        x_correlations = jax.random.normal(kx[1], (B, input_corr_dim), jnp.float32)
        x_morphology = jax.random.normal(kx[2], (B, input_morph_dim), jnp.float32)
        x_spatial_context = jax.random.normal(kx[3], (B, input_spcont_dim),
                                              jnp.float32)
        cov_list = jax.random.normal(kx[4], (B, n_covariates), jnp.float32)

        mu_z, log_std_z = encoder_hmivae_forward(
            x_mean, x_correlations, x_morphology, x_spatial_context, cov_list,
            prepared)
        jax.block_until_ready((mu_z, log_std_z))

        assert mu_z.shape == (B, latent_dim)
        assert log_std_z.shape == (B, latent_dim)

        # Verify against a plain-JAX f32 reference (bf16 MXU operands =>
        # loosened tolerances).
        mu_ref, std_ref = encoder_ref(
            x_mean, x_correlations, x_morphology, x_spatial_context, cov_list,
            params)
        assert jnp.allclose(mu_z, mu_ref, atol=5e-2, rtol=5e-2), \
            float(jnp.max(jnp.abs(mu_z - mu_ref)))
        assert jnp.allclose(log_std_z, std_ref, atol=5e-2, rtol=5e-2), \
            float(jnp.max(jnp.abs(log_std_z - std_ref)))

    print("KERNEL_OK")
</pallas_src>

<mosaic_0001>
module attributes {stable_mosaic.version = 11 : i64} {
  func.func @encoder_kernel(%arg0: i32, %arg1: memref<32x10xf32, #tpu.memory_space<vmem>>, %arg2: memref<32x15xf32, #tpu.memory_space<vmem>>, %arg3: memref<32x4xf32, #tpu.memory_space<vmem>>, %arg4: memref<32x10xf32, #tpu.memory_space<vmem>>, %arg5: memref<32x3xf32, #tpu.memory_space<vmem>>, %arg6: memref<5x16x42xbf16, #tpu.memory_space<vmem>>, %arg7: memref<42x42xbf16, #tpu.memory_space<vmem>>, %arg8: memref<42x42xbf16, #tpu.memory_space<vmem>>, %arg9: memref<3x42xf32, #tpu.memory_space<vmem>>, %arg10: memref<42x32xbf16, #tpu.memory_space<vmem>>, %arg11: memref<1x32xf32, #tpu.memory_space<vmem>>, %arg12: memref<32x32xf32, #tpu.memory_space<vmem>>) attributes {dimension_semantics = [#tpu.dimension_semantics<parallel>], iteration_bounds = array<i64: 2>, scalar_prefetch = 0 : i64, scratch_operands = 0 : i64, tpu.core_type = #tpu.core_type<tc>, window_params = [{transform_indices = @transform_0, window_bounds = array<i64: 32, 10>}, {transform_indices = @transform_1, window_bounds = array<i64: 32, 15>}, {transform_indices = @transform_2, window_bounds = array<i64: 32, 4>}, {transform_indices = @transform_3, window_bounds = array<i64: 32, 10>}, {transform_indices = @transform_4, window_bounds = array<i64: 32, 3>}, {pipeline_mode = #tpu.pipeline_mode<synchronous>, transform_indices = @transform_5, window_bounds = array<i64: 5, 16, 42>}, {pipeline_mode = #tpu.pipeline_mode<synchronous>, transform_indices = @transform_6, window_bounds = array<i64: 42, 42>}, {pipeline_mode = #tpu.pipeline_mode<synchronous>, transform_indices = @transform_7, window_bounds = array<i64: 42, 42>}, {pipeline_mode = #tpu.pipeline_mode<synchronous>, transform_indices = @transform_8, window_bounds = array<i64: 3, 42>}, {pipeline_mode = #tpu.pipeline_mode<synchronous>, transform_indices = @transform_9, window_bounds = array<i64: 42, 32>}, {pipeline_mode = #tpu.pipeline_mode<synchronous>, transform_indices = @transform_10, window_bounds = array<i64: 1, 32>}, {transform_indices = @transform_11, window_bounds = array<i64: 32, 32>}]} {
    %c0 = arith.constant 0 : index
    %c0_0 = arith.constant 0 : index
    %0 = vector.load %arg9[%c0, %c0_0] : memref<3x42xf32, #tpu.memory_space<vmem>>, vector<3x42xf32>
    %1 = vector.extract_strided_slice %0 {offsets = [0, 0], sizes = [1, 42], strides = [1, 1]} : vector<3x42xf32> to vector<1x42xf32>
    %2 = vector.extract_strided_slice %0 {offsets = [1, 0], sizes = [1, 42], strides = [1, 1]} : vector<3x42xf32> to vector<1x42xf32>
    %3 = vector.extract_strided_slice %0 {offsets = [2, 0], sizes = [1, 42], strides = [1, 1]} : vector<3x42xf32> to vector<1x42xf32>
    %c0_1 = arith.constant 0 : index
    %c0_2 = arith.constant 0 : index
    %4 = vector.load %arg1[%c0_1, %c0_2] : memref<32x10xf32, #tpu.memory_space<vmem>>, vector<32x10xf32>
    %5 = arith.truncf %4 : vector<32x10xf32> to vector<32x10xbf16>
    %c0_3 = arith.constant 0 : index
    %c0_4 = arith.constant 0 : index
    %c0_5 = arith.constant 0 : index
    %6 = vector.load %arg6[%c0_3, %c0_4, %c0_5] : memref<5x16x42xbf16, #tpu.memory_space<vmem>>, vector<1x10x42xbf16>
    %7 = vector.shape_cast %6 : vector<1x10x42xbf16> to vector<10x42xbf16>
    %cst = arith.constant dense<0.000000e+00> : vector<32x42xf32>
    %8 = tpu.matmul %5, %7, %cst {dimension_numbers = #tpu.dot_dimension_numbers<[1], [0], [0], [1], [0, 0, 1, 1], [], []>} : vector<32x10xbf16>, vector<10x42xbf16>, vector<32x42xf32> -> vector<32x42xf32>
    %c0_6 = arith.constant 0 : index
    %c0_7 = arith.constant 0 : index
    %9 = vector.load %arg2[%c0_6, %c0_7] : memref<32x15xf32, #tpu.memory_space<vmem>>, vector<32x15xf32>
    %10 = arith.truncf %9 : vector<32x15xf32> to vector<32x15xbf16>
    %c1 = arith.constant 1 : index
    %c0_8 = arith.constant 0 : index
    %c0_9 = arith.constant 0 : index
    %11 = vector.load %arg6[%c1, %c0_8, %c0_9] : memref<5x16x42xbf16, #tpu.memory_space<vmem>>, vector<1x15x42xbf16>
    %12 = vector.shape_cast %11 : vector<1x15x42xbf16> to vector<15x42xbf16>
    %cst_10 = arith.constant dense<0.000000e+00> : vector<32x42xf32>
    %13 = tpu.matmul %10, %12, %cst_10 {dimension_numbers = #tpu.dot_dimension_numbers<[1], [0], [0], [1], [0, 0, 1, 1], [], []>} : vector<32x15xbf16>, vector<15x42xbf16>, vector<32x42xf32> -> vector<32x42xf32>
    %14 = arith.addf %8, %13 : vector<32x42xf32>
    %c0_11 = arith.constant 0 : index
    %c0_12 = arith.constant 0 : index
    %15 = vector.load %arg3[%c0_11, %c0_12] : memref<32x4xf32, #tpu.memory_space<vmem>>, vector<32x4xf32>
    %16 = arith.truncf %15 : vector<32x4xf32> to vector<32x4xbf16>
    %c2 = arith.constant 2 : index
    %c0_13 = arith.constant 0 : index
    %c0_14 = arith.constant 0 : index
    %17 = vector.load %arg6[%c2, %c0_13, %c0_14] : memref<5x16x42xbf16, #tpu.memory_space<vmem>>, vector<1x4x42xbf16>
    %18 = vector.shape_cast %17 : vector<1x4x42xbf16> to vector<4x42xbf16>
    %cst_15 = arith.constant dense<0.000000e+00> : vector<32x42xf32>
    %19 = tpu.matmul %16, %18, %cst_15 {dimension_numbers = #tpu.dot_dimension_numbers<[1], [0], [0], [1], [0, 0, 1, 1], [], []>} : vector<32x4xbf16>, vector<4x42xbf16>, vector<32x42xf32> -> vector<32x42xf32>
    %20 = arith.addf %14, %19 : vector<32x42xf32>
    %c0_16 = arith.constant 0 : index
    %c0_17 = arith.constant 0 : index
    %21 = vector.load %arg4[%c0_16, %c0_17] : memref<32x10xf32, #tpu.memory_space<vmem>>, vector<32x10xf32>
    %22 = arith.truncf %21 : vector<32x10xf32> to vector<32x10xbf16>
    %c3 = arith.constant 3 : index
    %c0_18 = arith.constant 0 : index
    %c0_19 = arith.constant 0 : index
    %23 = vector.load %arg6[%c3, %c0_18, %c0_19] : memref<5x16x42xbf16, #tpu.memory_space<vmem>>, vector<1x10x42xbf16>
    %24 = vector.shape_cast %23 : vector<1x10x42xbf16> to vector<10x42xbf16>
    %cst_20 = arith.constant dense<0.000000e+00> : vector<32x42xf32>
    %25 = tpu.matmul %22, %24, %cst_20 {dimension_numbers = #tpu.dot_dimension_numbers<[1], [0], [0], [1], [0, 0, 1, 1], [], []>} : vector<32x10xbf16>, vector<10x42xbf16>, vector<32x42xf32> -> vector<32x42xf32>
    %26 = arith.addf %20, %25 : vector<32x42xf32>
    %c0_21 = arith.constant 0 : index
    %c0_22 = arith.constant 0 : index
    %27 = vector.load %arg5[%c0_21, %c0_22] : memref<32x3xf32, #tpu.memory_space<vmem>>, vector<32x3xf32>
    %28 = arith.truncf %27 : vector<32x3xf32> to vector<32x3xbf16>
    %c4 = arith.constant 4 : index
    %c0_23 = arith.constant 0 : index
    %c0_24 = arith.constant 0 : index
    %29 = vector.load %arg6[%c4, %c0_23, %c0_24] : memref<5x16x42xbf16, #tpu.memory_space<vmem>>, vector<1x3x42xbf16>
    %30 = vector.shape_cast %29 : vector<1x3x42xbf16> to vector<3x42xbf16>
    %cst_25 = arith.constant dense<0.000000e+00> : vector<32x42xf32>
    %31 = tpu.matmul %28, %30, %cst_25 {dimension_numbers = #tpu.dot_dimension_numbers<[1], [0], [0], [1], [0, 0, 1, 1], [], []>} : vector<32x3xbf16>, vector<3x42xbf16>, vector<32x42xf32> -> vector<32x42xf32>
    %32 = arith.addf %26, %31 : vector<32x42xf32>
    %33 = vector.broadcast %1 : vector<1x42xf32> to vector<32x42xf32>
    %34 = arith.addf %32, %33 : vector<32x42xf32>
    %cst_26 = arith.constant 0.000000e+00 : f32
    %35 = vector.broadcast %cst_26 : f32 to vector<32x42xf32>
    %36 = arith.cmpf ogt, %34, %35 : vector<32x42xf32>
    %cst_27 = arith.constant 0.000000e+00 : f32
    %37 = vector.broadcast %cst_27 : f32 to vector<32x42xf32>
    %38 = arith.minimumf %34, %37 : vector<32x42xf32>
    %39 = math.exp %38 : vector<32x42xf32>
    %cst_28 = arith.constant 1.000000e+00 : f32
    %40 = vector.broadcast %cst_28 : f32 to vector<32x42xf32>
    %41 = arith.subf %39, %40 : vector<32x42xf32>
    %42 = arith.select %36, %34, %41 : vector<32x42xi1>, vector<32x42xf32>
    %43 = arith.truncf %42 : vector<32x42xf32> to vector<32x42xbf16>
    %c0_29 = arith.constant 0 : index
    %c0_30 = arith.constant 0 : index
    %44 = vector.load %arg7[%c0_29, %c0_30] : memref<42x42xbf16, #tpu.memory_space<vmem>>, vector<42x42xbf16>
    %cst_31 = arith.constant dense<0.000000e+00> : vector<32x42xf32>
    %45 = tpu.matmul %43, %44, %cst_31 {dimension_numbers = #tpu.dot_dimension_numbers<[1], [0], [0], [1], [0, 0, 1, 1], [], []>} : vector<32x42xbf16>, vector<42x42xbf16>, vector<32x42xf32> -> vector<32x42xf32>
    %46 = vector.broadcast %2 : vector<1x42xf32> to vector<32x42xf32>
    %47 = arith.addf %45, %46 : vector<32x42xf32>
    %48 = tpu.iota {dimensions = array<i32: 1>} : vector<1x42xi32>
    %c32_i32 = arith.constant 32 : i32
    %49 = vector.broadcast %c32_i32 : i32 to vector<1x42xi32>
    %50 = arith.cmpi slt, %48, %49 : vector<1x42xi32>
    %cst_32 = arith.constant 0.000000e+00 : f32
    %51 = vector.broadcast %cst_32 : f32 to vector<32x42xf32>
    %52 = arith.cmpf ogt, %47, %51 : vector<32x42xf32>
    %cst_33 = arith.constant 0.000000e+00 : f32
    %53 = vector.broadcast %cst_33 : f32 to vector<32x42xf32>
    %54 = arith.minimumf %47, %53 : vector<32x42xf32>
    %55 = math.exp %54 : vector<32x42xf32>
    %cst_34 = arith.constant 1.000000e+00 : f32
    %56 = vector.broadcast %cst_34 : f32 to vector<32x42xf32>
    %57 = arith.subf %55, %56 : vector<32x42xf32>
    %58 = arith.select %52, %47, %57 : vector<32x42xi1>, vector<32x42xf32>
    %59 = vector.shape_cast %50 : vector<1x42xi1> to vector<1x42xi1>
    %60 = vector.broadcast %59 : vector<1x42xi1> to vector<32x42xi1>
    %61 = arith.select %60, %58, %47 : vector<32x42xi1>, vector<32x42xf32>
    %62 = arith.truncf %61 : vector<32x42xf32> to vector<32x42xbf16>
    %c0_35 = arith.constant 0 : index
    %c0_36 = arith.constant 0 : index
    %63 = vector.load %arg8[%c0_35, %c0_36] : memref<42x42xbf16, #tpu.memory_space<vmem>>, vector<42x42xbf16>
    %cst_37 = arith.constant dense<0.000000e+00> : vector<32x42xf32>
    %64 = tpu.matmul %62, %63, %cst_37 {dimension_numbers = #tpu.dot_dimension_numbers<[1], [0], [0], [1], [0, 0, 1, 1], [], []>} : vector<32x42xbf16>, vector<42x42xbf16>, vector<32x42xf32> -> vector<32x42xf32>
    %65 = vector.broadcast %3 : vector<1x42xf32> to vector<32x42xf32>
    %66 = arith.addf %64, %65 : vector<32x42xf32>
    %cst_38 = arith.constant 0.000000e+00 : f32
    %67 = vector.broadcast %cst_38 : f32 to vector<32x42xf32>
    %68 = arith.cmpf ogt, %66, %67 : vector<32x42xf32>
    %cst_39 = arith.constant 0.000000e+00 : f32
    %69 = vector.broadcast %cst_39 : f32 to vector<32x42xf32>
    %70 = arith.minimumf %66, %69 : vector<32x42xf32>
    %71 = math.exp %70 : vector<32x42xf32>
    %cst_40 = arith.constant 1.000000e+00 : f32
    %72 = vector.broadcast %cst_40 : f32 to vector<32x42xf32>
    %73 = arith.subf %71, %72 : vector<32x42xf32>
    %74 = arith.select %68, %66, %73 : vector<32x42xi1>, vector<32x42xf32>
    %75 = arith.truncf %74 : vector<32x42xf32> to vector<32x42xbf16>
    %c0_41 = arith.constant 0 : index
    %c0_42 = arith.constant 0 : index
    %76 = vector.load %arg10[%c0_41, %c0_42] : memref<42x32xbf16, #tpu.memory_space<vmem>>, vector<42x32xbf16>
    %cst_43 = arith.constant dense<0.000000e+00> : vector<32x32xf32>
    %77 = tpu.matmul %75, %76, %cst_43 {dimension_numbers = #tpu.dot_dimension_numbers<[1], [0], [0], [1], [0, 0, 1, 1], [], []>} : vector<32x42xbf16>, vector<42x32xbf16>, vector<32x32xf32> -> vector<32x32xf32>
    %c0_44 = arith.constant 0 : index
    %c0_45 = arith.constant 0 : index
    %78 = vector.load %arg11[%c0_44, %c0_45] : memref<1x32xf32, #tpu.memory_space<vmem>>, vector<1x32xf32>
    %79 = vector.broadcast %78 : vector<1x32xf32> to vector<32x32xf32>
    %80 = arith.addf %77, %79 : vector<32x32xf32>
    %c0_46 = arith.constant 0 : index
    %c0_47 = arith.constant 0 : index
    %81 = vector.load %arg12[%c0_46, %c0_47] : memref<32x32xf32, #tpu.memory_space<vmem>>, vector<32x32xf32>
    tpu.vector_store %arg12[%c0_46, %c0_47], %80 {strides = array<i32>} : memref<32x32xf32, #tpu.memory_space<vmem>>, vector<32x32xf32>,
    return
  }
  func.func @transform_0(%arg0: i32) -> (i32, i32) {
    %c0_i32 = arith.constant 0 : i32
    %c0_i32_0 = arith.constant 0 : i32
    return %arg0, %c0_i32 : i32, i32
  }
  func.func @transform_1(%arg0: i32) -> (i32, i32) {
    %c0_i32 = arith.constant 0 : i32
    %c0_i32_0 = arith.constant 0 : i32
    return %arg0, %c0_i32 : i32, i32
  }
  func.func @transform_2(%arg0: i32) -> (i32, i32) {
    %c0_i32 = arith.constant 0 : i32
    %c0_i32_0 = arith.constant 0 : i32
    return %arg0, %c0_i32 : i32, i32
  }
  func.func @transform_3(%arg0: i32) -> (i32, i32) {
    %c0_i32 = arith.constant 0 : i32
    %c0_i32_0 = arith.constant 0 : i32
    return %arg0, %c0_i32 : i32, i32
  }
  func.func @transform_4(%arg0: i32) -> (i32, i32) {
    %c0_i32 = arith.constant 0 : i32
    %c0_i32_0 = arith.constant 0 : i32
    return %arg0, %c0_i32 : i32, i32
  }
  func.func @transform_5(%arg0: i32) -> (i32, i32, i32) {
    %c0_i32 = arith.constant 0 : i32
    %c0_i32_0 = arith.constant 0 : i32
    %c0_i32_1 = arith.constant 0 : i32
    %c0_i32_2 = arith.constant 0 : i32
    return %c0_i32, %c0_i32_0, %c0_i32_1 : i32, i32, i32
  }
  func.func @transform_6(%arg0: i32) -> (i32, i32) {
    %c0_i32 = arith.constant 0 : i32
    %c0_i32_0 = arith.constant 0 : i32
    %c0_i32_1 = arith.constant 0 : i32
    return %c0_i32, %c0_i32_0 : i32, i32
  }
  func.func @transform_7(%arg0: i32) -> (i32, i32) {
    %c0_i32 = arith.constant 0 : i32
    %c0_i32_0 = arith.constant 0 : i32
    %c0_i32_1 = arith.constant 0 : i32
    return %c0_i32, %c0_i32_0 : i32, i32
  }
  func.func @transform_8(%arg0: i32) -> (i32, i32) {
    %c0_i32 = arith.constant 0 : i32
    %c0_i32_0 = arith.constant 0 : i32
    %c0_i32_1 = arith.constant 0 : i32
    return %c0_i32, %c0_i32_0 : i32, i32
  }
  func.func @transform_9(%arg0: i32) -> (i32, i32) {
    %c0_i32 = arith.constant 0 : i32
    %c0_i32_0 = arith.constant 0 : i32
    %c0_i32_1 = arith.constant 0 : i32
    return %c0_i32, %c0_i32_0 : i32, i32
  }
  func.func @transform_10(%arg0: i32) -> (i32, i32) {
    %c0_i32 = arith.constant 0 : i32
    %c0_i32_0 = arith.constant 0 : i32
    %c0_i32_1 = arith.constant 0 : i32
    return %c0_i32, %c0_i32_0 : i32, i32
  }
  func.func @transform_11(%arg0: i32) -> (i32, i32) {
    %c0_i32 = arith.constant 0 : i32
    %c0_i32_0 = arith.constant 0 : i32
    return %arg0, %c0_i32 : i32, i32
  }
}

</mosaic_0001>

<llo_original>
// kernel: tpu_custom_call.1
$region0: #{tpu_custom_call.1}
  #allocation0 [shape = 'u32[]', space=smem, size = 0x4, offset = 0x4, fixed_abs, tag = 'smem constant byte address 0x4 - core index']
  #allocation1 [shape = 'u32[144,128]{1,0:T(1,128)}', space=vmem, size = 0x12000, scoped, tag = 'internal scratch']
  %s0 = inlined_call_operand.vmem [shape: f32[64,10], index: 0, kind: input, shape index: {}]
  %s1 = inlined_call_operand.vmem [shape: f32[64,15], index: 1, kind: input, shape index: {}]
  %s2 = inlined_call_operand.vmem [shape: f32[64,4], index: 2, kind: input, shape index: {}]
  %s3 = inlined_call_operand.vmem [shape: f32[64,10], index: 3, kind: input, shape index: {}]
  %s4 = inlined_call_operand.vmem [shape: f32[64,3], index: 4, kind: input, shape index: {}]
  %s5 = inlined_call_operand.vmem [shape: bf16[5,16,42], index: 5, kind: input, shape index: {}]
  %s6 = inlined_call_operand.vmem [shape: bf16[42,42], index: 6, kind: input, shape index: {}]
  %s7 = inlined_call_operand.vmem [shape: bf16[42,42], index: 7, kind: input, shape index: {}]
  %s8 = inlined_call_operand.vmem [shape: f32[3,42], index: 8, kind: input, shape index: {}]
  %s9 = inlined_call_operand.vmem [shape: bf16[42,32], index: 9, kind: input, shape index: {}]
  %s10 = inlined_call_operand.vmem [shape: f32[1,32], index: 10, kind: input, shape index: {}]
  %s11 = inlined_call_operand.vmem [shape: f32[64,32], index: 11, kind: output, shape index: {}]
  %s12 = sld [smem:[#allocation0]]
  $region77: #{tpu_custom_call.1} parent=0
    _
  %s14 = ssub.s32 1, %s12
  %s15 = scalar_select 0, %s14, %s12
  loop: start=0, step=1, limit=4
  $region2: #{tpu_custom_call.1} parent=0 // loop_pre_header
    _
  $region3: #{tpu_custom_call.1} parent=0 // loop_header
    %s17 = sphi 0, %s21
    %p18 = scmp.ge.s32.totalorder %s17, 4
    %s27 = sphi 0, %s29
    %s30 = sphi 0, %s27
    %s31 = sphi 0, %s30
    %s47 = sphi 0, %s31
    %s53 = sphi 0, %s55
    %s56 = sphi 0, %s53
    %s57 = sphi 0, %s56
    %s73 = sphi 0, %s57
    %s79 = sphi 0, %s81
    %s82 = sphi 0, %s79
    %s83 = sphi 0, %s82
    %s99 = sphi 0, %s83
    %s105 = sphi 0, %s107
    %s108 = sphi 0, %s105
    %s109 = sphi 0, %s108
    %s125 = sphi 0, %s109
    %s131 = sphi 0, %s133
    %s134 = sphi 0, %s131
    %s135 = sphi 0, %s134
    %s151 = sphi 0, %s135
    %s155 = sphi 0, %s155
    %s157 = sphi 0, %s155
    %s158 = sphi 0, %s157
    %s172 = sphi 0, %s158
    %s176 = sphi 0, %s176
    %s178 = sphi 0, %s176
    %s179 = sphi 0, %s178
    %s193 = sphi 0, %s179
    %s197 = sphi 0, %s197
    %s199 = sphi 0, %s197
    %s200 = sphi 0, %s199
    %s214 = sphi 0, %s200
    %s218 = sphi 0, %s218
    %s220 = sphi 0, %s218
    %s221 = sphi 0, %s220
    %s235 = sphi 0, %s221
    %s239 = sphi 0, %s239
    %s241 = sphi 0, %s239
    %s242 = sphi 0, %s241
    %s256 = sphi 0, %s242
    %s260 = sphi 0, %s260
    %s262 = sphi 0, %s260
    %s263 = sphi 0, %s262
    %s277 = sphi 0, %s263
    %s283 = sphi 0, %s285
    %s286 = sphi 0, %s283
    %s287 = sphi 0, %s286
    %s303 = sphi 0, %s287
  $region4: #{tpu_custom_call.1} parent=0 // loop_header_branch
    %20 = sbr.rel (%p18) target = $region8
  $region5: #{tpu_custom_call.1} parent=0 // loop_body
    %s22 = ssub.s32 %s17, 1
    %s23 = ssub.s32 %s17, 2
    %s24 = sadd.s32 %s17, 1
    %s25 = ssub.s32 %s17, %s24
    %p26 = scmp.eq.s32.totalorder %s25, 0
    %s28 = sadd.s32 %s27, 1
    %s29 = scalar_select %p26, %s27, %s28
    %p32 = pneg %p26
    %p33 = scmp.eq.s32.totalorder %s17, 1
    %p34 = por %p32, %p33
    %p35 = scmp.ne.s32.totalorder %s27, %s30
    %p36 = scmp.eq.s32.totalorder %s17, 0
    %p37 = por %p35, %p36
    %p38 = scmp.ne.s32.totalorder %s27, %s30
    %p39 = scmp.eq.s32.totalorder %s22, 1
    %p40 = por %p38, %p39
    %p41 = scmp.ne.s32.totalorder %s30, %s31
    %p42 = scmp.eq.s32.totalorder %s22, 0
    %p43 = por %p41, %p42
    %p44 = scmp.ne.s32.totalorder %s30, %s31
    %p45 = scmp.eq.s32.totalorder %s23, 1
    %p46 = por %p44, %p45
    %p48 = scmp.ne.s32.totalorder %s31, %s47
    %p49 = scmp.eq.s32.totalorder %s23, 0
    %p50 = por %p48, %p49
    %s51 = ssub.s32 %s17, %s24
    %p52 = scmp.eq.s32.totalorder %s51, 0
    %s54 = sadd.s32 %s53, 1
    %s55 = scalar_select %p52, %s53, %s54
    %p58 = pneg %p52
    %p59 = scmp.eq.s32.totalorder %s17, 1
    %p60 = por %p58, %p59
    %p61 = scmp.ne.s32.totalorder %s53, %s56
    %p62 = scmp.eq.s32.totalorder %s17, 0
    %p63 = por %p61, %p62
    %p64 = scmp.ne.s32.totalorder %s53, %s56
    %p65 = scmp.eq.s32.totalorder %s22, 1
    %p66 = por %p64, %p65
    %p67 = scmp.ne.s32.totalorder %s56, %s57
    %p68 = scmp.eq.s32.totalorder %s22, 0
    %p69 = por %p67, %p68
    %p70 = scmp.ne.s32.totalorder %s56, %s57
    %p71 = scmp.eq.s32.totalorder %s23, 1
    %p72 = por %p70, %p71
    %p74 = scmp.ne.s32.totalorder %s57, %s73
    %p75 = scmp.eq.s32.totalorder %s23, 0
    %p76 = por %p74, %p75
    %s77 = ssub.s32 %s17, %s24
    %p78 = scmp.eq.s32.totalorder %s77, 0
    %s80 = sadd.s32 %s79, 1
    %s81 = scalar_select %p78, %s79, %s80
    %p84 = pneg %p78
    %p85 = scmp.eq.s32.totalorder %s17, 1
    %p86 = por %p84, %p85
    %p87 = scmp.ne.s32.totalorder %s79, %s82
    %p88 = scmp.eq.s32.totalorder %s17, 0
    %p89 = por %p87, %p88
    %p90 = scmp.ne.s32.totalorder %s79, %s82
    %p91 = scmp.eq.s32.totalorder %s22, 1
    %p92 = por %p90, %p91
    %p93 = scmp.ne.s32.totalorder %s82, %s83
    %p94 = scmp.eq.s32.totalorder %s22, 0
    %p95 = por %p93, %p94
    %p96 = scmp.ne.s32.totalorder %s82, %s83
    %p97 = scmp.eq.s32.totalorder %s23, 1
    %p98 = por %p96, %p97
    %p100 = scmp.ne.s32.totalorder %s83, %s99
    %p101 = scmp.eq.s32.totalorder %s23, 0
    %p102 = por %p100, %p101
    %s103 = ssub.s32 %s17, %s24
    %p104 = scmp.eq.s32.totalorder %s103, 0
    %s106 = sadd.s32 %s105, 1
    %s107 = scalar_select %p104, %s105, %s106
    %p110 = pneg %p104
    %p111 = scmp.eq.s32.totalorder %s17, 1
    %p112 = por %p110, %p111
    %p113 = scmp.ne.s32.totalorder %s105, %s108
    %p114 = scmp.eq.s32.totalorder %s17, 0
    %p115 = por %p113, %p114
    %p116 = scmp.ne.s32.totalorder %s105, %s108
    %p117 = scmp.eq.s32.totalorder %s22, 1
    %p118 = por %p116, %p117
    %p119 = scmp.ne.s32.totalorder %s108, %s109
    %p120 = scmp.eq.s32.totalorder %s22, 0
    %p121 = por %p119, %p120
    %p122 = scmp.ne.s32.totalorder %s108, %s109
    %p123 = scmp.eq.s32.totalorder %s23, 1
    %p124 = por %p122, %p123
    %p126 = scmp.ne.s32.totalorder %s109, %s125
    %p127 = scmp.eq.s32.totalorder %s23, 0
    %p128 = por %p126, %p127
    %s129 = ssub.s32 %s17, %s24
    %p130 = scmp.eq.s32.totalorder %s129, 0
    %s132 = sadd.s32 %s131, 1
    %s133 = scalar_select %p130, %s131, %s132
    %p136 = pneg %p130
    %p137 = scmp.eq.s32.totalorder %s17, 1
    %p138 = por %p136, %p137
    %p139 = scmp.ne.s32.totalorder %s131, %s134
    %p140 = scmp.eq.s32.totalorder %s17, 0
    %p141 = por %p139, %p140
    %p142 = scmp.ne.s32.totalorder %s131, %s134
    %p143 = scmp.eq.s32.totalorder %s22, 1
    %p144 = por %p142, %p143
    %p145 = scmp.ne.s32.totalorder %s134, %s135
    %p146 = scmp.eq.s32.totalorder %s22, 0
    %p147 = por %p145, %p146
    %p148 = scmp.ne.s32.totalorder %s134, %s135
    %p149 = scmp.eq.s32.totalorder %s23, 1
    %p150 = por %p148, %p149
    %p152 = scmp.ne.s32.totalorder %s135, %s151
    %p153 = scmp.eq.s32.totalorder %s23, 0
    %p154 = por %p152, %p153
    %s156 = sadd.s32 %s155, 1
    %p159 = scmp.eq.s32.totalorder %s17, 1
    %p160 = scmp.ne.s32.totalorder %s155, %s157
    %p161 = scmp.eq.s32.totalorder %s17, 0
    %p162 = por %p160, %p161
    %p163 = scmp.ne.s32.totalorder %s155, %s157
    %p164 = scmp.eq.s32.totalorder %s22, 1
    %p165 = por %p163, %p164
    %p166 = scmp.ne.s32.totalorder %s157, %s158
    %p167 = scmp.eq.s32.totalorder %s22, 0
    %p168 = por %p166, %p167
    %p169 = scmp.ne.s32.totalorder %s157, %s158
    %p170 = scmp.eq.s32.totalorder %s23, 1
    %p171 = por %p169, %p170
    %p173 = scmp.ne.s32.totalorder %s158, %s172
    %p174 = scmp.eq.s32.totalorder %s23, 0
    %p175 = por %p173, %p174
    %s177 = sadd.s32 %s176, 1
    %p180 = scmp.eq.s32.totalorder %s17, 1
    %p181 = scmp.ne.s32.totalorder %s176, %s178
    %p182 = scmp.eq.s32.totalorder %s17, 0
    %p183 = por %p181, %p182
    %p184 = scmp.ne.s32.totalorder %s176, %s178
    %p185 = scmp.eq.s32.totalorder %s22, 1
    %p186 = por %p184, %p185
    %p187 = scmp.ne.s32.totalorder %s178, %s179
    %p188 = scmp.eq.s32.totalorder %s22, 0
    %p189 = por %p187, %p188
    %p190 = scmp.ne.s32.totalorder %s178, %s179
    %p191 = scmp.eq.s32.totalorder %s23, 1
    %p192 = por %p190, %p191
    %p194 = scmp.ne.s32.totalorder %s179, %s193
    %p195 = scmp.eq.s32.totalorder %s23, 0
    %p196 = por %p194, %p195
    %s198 = sadd.s32 %s197, 1
    %p201 = scmp.eq.s32.totalorder %s17, 1
    %p202 = scmp.ne.s32.totalorder %s197, %s199
    %p203 = scmp.eq.s32.totalorder %s17, 0
    %p204 = por %p202, %p203
    %p205 = scmp.ne.s32.totalorder %s197, %s199
    %p206 = scmp.eq.s32.totalorder %s22, 1
    %p207 = por %p205, %p206
    %p208 = scmp.ne.s32.totalorder %s199, %s200
    %p209 = scmp.eq.s32.totalorder %s22, 0
    %p210 = por %p208, %p209
    %p211 = scmp.ne.s32.totalorder %s199, %s200
    %p212 = scmp.eq.s32.totalorder %s23, 1
    %p213 = por %p211, %p212
    %p215 = scmp.ne.s32.totalorder %s200, %s214
    %p216 = scmp.eq.s32.totalorder %s23, 0
    %p217 = por %p215, %p216
    %s219 = sadd.s32 %s218, 1
    %p222 = scmp.eq.s32.totalorder %s17, 1
    %p223 = scmp.ne.s32.totalorder %s218, %s220
    %p224 = scmp.eq.s32.totalorder %s17, 0
    %p225 = por %p223, %p224
    %p226 = scmp.ne.s32.totalorder %s218, %s220
    %p227 = scmp.eq.s32.totalorder %s22, 1
    %p228 = por %p226, %p227
    %p229 = scmp.ne.s32.totalorder %s220, %s221
    %p230 = scmp.eq.s32.totalorder %s22, 0
    %p231 = por %p229, %p230
    %p232 = scmp.ne.s32.totalorder %s220, %s221
    %p233 = scmp.eq.s32.totalorder %s23, 1
    %p234 = por %p232, %p233
    %p236 = scmp.ne.s32.totalorder %s221, %s235
    %p237 = scmp.eq.s32.totalorder %s23, 0
    %p238 = por %p236, %p237
    %s240 = sadd.s32 %s239, 1
    %p243 = scmp.eq.s32.totalorder %s17, 1
    %p244 = scmp.ne.s32.totalorder %s239, %s241
    %p245 = scmp.eq.s32.totalorder %s17, 0
    %p246 = por %p244, %p245
    %p247 = scmp.ne.s32.totalorder %s239, %s241
    %p248 = scmp.eq.s32.totalorder %s22, 1
    %p249 = por %p247, %p248
    %p250 = scmp.ne.s32.totalorder %s241, %s242
    %p251 = scmp.eq.s32.totalorder %s22, 0
    %p252 = por %p250, %p251
    %p253 = scmp.ne.s32.totalorder %s241, %s242
    %p254 = scmp.eq.s32.totalorder %s23, 1
    %p255 = por %p253, %p254
    %p257 = scmp.ne.s32.totalorder %s242, %s256
    %p258 = scmp.eq.s32.totalorder %s23, 0
    %p259 = por %p257, %p258
    %s261 = sadd.s32 %s260, 1
    %p264 = scmp.eq.s32.totalorder %s17, 1
    %p265 = scmp.ne.s32.totalorder %s260, %s262
    %p266 = scmp.eq.s32.totalorder %s17, 0
    %p267 = por %p265, %p266
    %p268 = scmp.ne.s32.totalorder %s260, %s262
    %p269 = scmp.eq.s32.totalorder %s22, 1
    %p270 = por %p268, %p269
    %p271 = scmp.ne.s32.totalorder %s262, %s263
    %p272 = scmp.eq.s32.totalorder %s22, 0
    %p273 = por %p271, %p272
    %p274 = scmp.ne.s32.totalorder %s262, %s263
    %p275 = scmp.eq.s32.totalorder %s23, 1
    %p276 = por %p274, %p275
    %p278 = scmp.ne.s32.totalorder %s263, %s277
    %p279 = scmp.eq.s32.totalorder %s23, 0
    %p280 = por %p278, %p279
    %s281 = ssub.s32 %s17, %s24
    %p282 = scmp.eq.s32.totalorder %s281, 0
    %s284 = sadd.s32 %s283, 1
    %s285 = scalar_select %p282, %s283, %s284
    %p288 = pneg %p282
    %p289 = scmp.eq.s32.totalorder %s17, 1
    %p290 = por %p288, %p289
    %p291 = scmp.ne.s32.totalorder %s283, %s286
    %p292 = scmp.eq.s32.totalorder %s17, 0
    %p293 = por %p291, %p292
    %p294 = scmp.ne.s32.totalorder %s283, %s286
    %p295 = scmp.eq.s32.totalorder %s22, 1
    %p296 = por %p294, %p295
    %p297 = scmp.ne.s32.totalorder %s286, %s287
    %p298 = scmp.eq.s32.totalorder %s22, 0
    %p299 = por %p297, %p298
    %p300 = scmp.ne.s32.totalorder %s286, %s287
    %p301 = scmp.eq.s32.totalorder %s23, 1
    %p302 = por %p300, %p301
    %p304 = scmp.ne.s32.totalorder %s287, %s303
    %p305 = scmp.eq.s32.totalorder %s23, 0
    %p306 = por %p304, %p305
    %p307 = scmp.le.s32.totalorder 1, %s17
    %p308 = scmp.lt.s32.totalorder %s17, 3
    %p309 = pnand %p307, %p308
    %p310 = pneg %p309
    // Predicated region
    $region9: #{tpu_custom_call.1} parent=5 // pred_check
      _
    $region10: #{tpu_custom_call.1} parent=5 // pred_check_branch
      %312 = sbr.rel (%p309) target = $region12
    $region11: #{tpu_custom_call.1} parent=5 // pred_region
      %s313 = ssub.s32 %s17, 1
      // Predicated region
      $region13: #{tpu_custom_call.1} parent=11 // pred_check
        %p314 = pneg %p168
      $region14: #{tpu_custom_call.1} parent=11 // pred_check_branch
        %316 = sbr.rel (%p314) target = $region16
      $region15: #{tpu_custom_call.1} parent=11 // pred_region
        _
      $region16: #{tpu_custom_call.1} parent=11 // pred_fallthru
        _
      // Predicated region
      $region17: #{tpu_custom_call.1} parent=11 // pred_check
        %p317 = pneg %p189
      $region18: #{tpu_custom_call.1} parent=11 // pred_check_branch
        %319 = sbr.rel (%p317) target = $region20
      $region19: #{tpu_custom_call.1} parent=11 // pred_region
        _
      $region20: #{tpu_custom_call.1} parent=11 // pred_fallthru
        _
      // Predicated region
      $region21: #{tpu_custom_call.1} parent=11 // pred_check
        %p320 = pneg %p210
      $region22: #{tpu_custom_call.1} parent=11 // pred_check_branch
        %322 = sbr.rel (%p320) target = $region24
      $region23: #{tpu_custom_call.1} parent=11 // pred_region
        _
      $region24: #{tpu_custom_call.1} parent=11 // pred_fallthru
        _
      // Predicated region
      $region25: #{tpu_custom_call.1} parent=11 // pred_check
        %p323 = pneg %p231
      $region26: #{tpu_custom_call.1} parent=11 // pred_check_branch
        %325 = sbr.rel (%p323) target = $region28
      $region27: #{tpu_custom_call.1} parent=11 // pred_region
        _
      $region28: #{tpu_custom_call.1} parent=11 // pred_fallthru
        _
      // Predicated region
      $region29: #{tpu_custom_call.1} parent=11 // pred_check
        %p326 = pneg %p252
      $region30: #{tpu_custom_call.1} parent=11 // pred_check_branch
        %328 = sbr.rel (%p326) target = $region32
      $region31: #{tpu_custom_call.1} parent=11 // pred_region
        _
      $region32: #{tpu_custom_call.1} parent=11 // pred_fallthru
        _
      // Predicated region
      $region33: #{tpu_custom_call.1} parent=11 // pred_check
        %p329 = pneg %p273
      $region34: #{tpu_custom_call.1} parent=11 // pred_check_branch
        %331 = sbr.rel (%p329) target = $region36
      $region35: #{tpu_custom_call.1} parent=11 // pred_region
        _
      $region36: #{tpu_custom_call.1} parent=11 // pred_fallthru
        _
    $region12: #{tpu_custom_call.1} parent=5 // pred_fallthru
      _
    %p332 = scmp.lt.s32.totalorder %s17, 2
    // Predicated region
    $region37: #{tpu_custom_call.1} parent=5 // pred_check
      %p333 = pneg %p332
    $region38: #{tpu_custom_call.1} parent=5 // pred_check_branch
      %335 = sbr.rel (%p333) target = $region40
    $region39: #{tpu_custom_call.1} parent=5 // pred_region
      // Predicated region
      $region41: #{tpu_custom_call.1} parent=39 // pred_check
        %p336 = pneg %p37
      $region42: #{tpu_custom_call.1} parent=39 // pred_check_branch
        %338 = sbr.rel (%p336) target = $region44
      $region43: #{tpu_custom_call.1} parent=39 // pred_region
        %s339 = smul.u32 4, %s17
        %p340 = scmp.lt.s32.totalorder %s339, 7
        %s341 = scalar_select %p340, %s339, 7
        %s342 = smul.addr %s341, 8
        %s343 = scalar_lea.vmem %s0, %s342
        %s344 = smul.u32 4, %s17
      $region44: #{tpu_custom_call.1} parent=39 // pred_fallthru
        _
      // Predicated region
      $region45: #{tpu_custom_call.1} parent=39 // pred_check
        %p345 = pneg %p63
      $region46: #{tpu_custom_call.1} parent=39 // pred_check_branch
        %347 = sbr.rel (%p345) target = $region48
      $region47: #{tpu_custom_call.1} parent=39 // pred_region
        %s348 = smul.u32 4, %s17
        %p349 = scmp.lt.s32.totalorder %s348, 7
        %s350 = scalar_select %p349, %s348, 7
        %s351 = smul.addr %s350, 8
        %s352 = scalar_lea.vmem %s1, %s351
        %s353 = smul.u32 4, %s17
      $region48: #{tpu_custom_call.1} parent=39 // pred_fallthru
        _
      // Predicated region
      $region49: #{tpu_custom_call.1} parent=39 // pred_check
        %p354 = pneg %p89
      $region50: #{tpu_custom_call.1} parent=39 // pred_check_branch
        %356 = sbr.rel (%p354) target = $region52
      $region51: #{tpu_custom_call.1} parent=39 // pred_region
        %s357 = smul.u32 4, %s17
        %p358 = scmp.lt.s32.totalorder %s357, 7
        %s359 = scalar_select %p358, %s357, 7
        %s360 = smul.addr %s359, 8
        %s361 = scalar_lea.vmem %s2, %s360
        %s362 = smul.u32 4, %s17
      $region52: #{tpu_custom_call.1} parent=39 // pred_fallthru
        _
      // Predicated region
      $region53: #{tpu_custom_call.1} parent=39 // pred_check
        %p363 = pneg %p115
      $region54: #{tpu_custom_call.1} parent=39 // pred_check_branch
        %365 = sbr.rel (%p363) target = $region56
      $region55: #{tpu_custom_call.1} parent=39 // pred_region
        %s366 = smul.u32 4, %s17
        %p367 = scmp.lt.s32.totalorder %s366, 7
        %s368 = scalar_select %p367, %s366, 7
        %s369 = smul.addr %s368, 8
        %s370 = scalar_lea.vmem %s3, %s369
        %s371 = smul.u32 4, %s17
      $region56: #{tpu_custom_call.1} parent=39 // pred_fallthru
        _
      // Predicated region
      $region57: #{tpu_custom_call.1} parent=39 // pred_check
        %p372 = pneg %p141
      $region58: #{tpu_custom_call.1} parent=39 // pred_check_branch
        %374 = sbr.rel (%p372) target = $region60
      $region59: #{tpu_custom_call.1} parent=39 // pred_region
        %s375 = smul.u32 4, %s17
        %p376 = scmp.lt.s32.totalorder %s375, 7
        %s377 = scalar_select %p376, %s375, 7
        %s378 = smul.addr %s377, 8
        %s379 = scalar_lea.vmem %s4, %s378
        %s380 = smul.u32 4, %s17
      $region60: #{tpu_custom_call.1} parent=39 // pred_fallthru
        _
    $region40: #{tpu_custom_call.1} parent=5 // pred_fallthru
      _
    %p381 = scmp.le.s32.totalorder 1, %s17
    %p382 = scmp.lt.s32.totalorder %s17, 3
    %p383 = pnand %p381, %p382
    %p384 = pneg %p383
    // Predicated region
    $region61: #{tpu_custom_call.1} parent=5 // pred_check
      _
    $region62: #{tpu_custom_call.1} parent=5 // pred_check_branch
      %386 = sbr.rel (%p383) target = $region64
    $region63: #{tpu_custom_call.1} parent=5 // pred_region
      %s387 = ssub.s32 %s17, 1
      %s388 = smul.u32 4, %s22
      %p389 = scmp.lt.s32.totalorder %s388, 7
      %s390 = scalar_select %p389, %s388, 7
      %s391 = smul.addr %s390, 8
      %s392 = scalar_lea.vmem %s0, %s391
      %p393 = pneg %p43
      %p394 = pneg %p40
      %s395 = smul.u32 4, %s22
      %p396 = scmp.lt.s32.totalorder %s395, 7
      %s397 = scalar_select %p396, %s395, 7
      %s398 = smul.addr %s397, 8
      %s399 = scalar_lea.vmem %s1, %s398
      %p400 = pneg %p69
      %p401 = pneg %p66
      %s402 = smul.u32 4, %s22
      %p403 = scmp.lt.s32.totalorder %s402, 7
      %s404 = scalar_select %p403, %s402, 7
      %s405 = smul.addr %s404, 8
      %s406 = scalar_lea.vmem %s2, %s405
      %p407 = pneg %p95
      %p408 = pneg %p92
      %s409 = smul.u32 4, %s22
      %p410 = scmp.lt.s32.totalorder %s409, 7
      %s411 = scalar_select %p410, %s409, 7
      %s412 = smul.addr %s411, 8
      %s413 = scalar_lea.vmem %s3, %s412
      %p414 = pneg %p121
      %p415 = pneg %p118
      %s416 = smul.u32 4, %s22
      %p417 = scmp.lt.s32.totalorder %s416, 7
      %s418 = scalar_select %p417, %s416, 7
      %s419 = smul.addr %s418, 8
      %s420 = scalar_lea.vmem %s4, %s419
      %p421 = pneg %p147
      %p422 = pneg %p144
      %p423 = pneg %p168
      %p424 = pneg %p165
      %p425 = pneg %p189
      %p426 = pneg %p186
      %p427 = pneg %p210
      %p428 = pneg %p207
      %p429 = pneg %p231
      %p430 = pneg %p228
      %p431 = pneg %p252
      %p432 = pneg %p249
      %p433 = pneg %p273
      %p434 = pneg %p270
      %p435 = pneg %p299
      %p436 = pneg %p296
      %s437 = smul.u32 4, %s22
      %p438 = scmp.lt.s32.totalorder %s437, 7
      %s439 = scalar_select %p438, %s437, 7
      %s440 = smul.addr %s439, 8
      %s441 = scalar_lea.vmem %s11, %s440
      %s442 = smul.u32 4, %s22
      %p443 = scmp.lt.s32.totalorder %s442, 7
      %s444 = scalar_select %p443, %s442, 7
      %s445 = smul.addr %s444, 8
      %s446 = scalar_lea.vmem %s0, %s445
      %s447 = smul.u32 4, %s22
      %s448 = smul.u32 4, %s22
      %p449 = scmp.lt.s32.totalorder %s448, 7
      %s450 = scalar_select %p449, %s448, 7
      %s451 = smul.addr %s450, 8
      %s452 = scalar_lea.vmem %s1, %s451
      %s453 = smul.u32 4, %s22
      %s454 = smul.u32 4, %s22
      %p455 = scmp.lt.s32.totalorder %s454, 7
      %s456 = scalar_select %p455, %s454, 7
      %s457 = smul.addr %s456, 8
      %s458 = scalar_lea.vmem %s2, %s457
      %s459 = smul.u32 4, %s22
      %s460 = smul.u32 4, %s22
      %p461 = scmp.lt.s32.totalorder %s460, 7
      %s462 = scalar_select %p461, %s460, 7
      %s463 = smul.addr %s462, 8
      %s464 = scalar_lea.vmem %s3, %s463
      %s465 = smul.u32 4, %s22
      %s466 = smul.u32 4, %s22
      %p467 = scmp.lt.s32.totalorder %s466, 7
      %s468 = scalar_select %p467, %s466, 7
      %s469 = smul.addr %s468, 8
      %s470 = scalar_lea.vmem %s4, %s469
      %s471 = smul.u32 4, %s22
      %s472 = smul.u32 4, %s22
      %p473 = scmp.lt.s32.totalorder %s472, 7
      %s474 = scalar_select %p473, %s472, 7
      %s475 = smul.addr %s474, 8
      %s476 = scalar_lea.vmem %s11, %s475
      %s477 = smul.u32 4, %s22
      %v479 = vld [vmem:[%s8] sm:$0x7]
      %v480 = vld [vmem:[%s446] sm:$0xff]
      %v481 = vld [vmem:[%s446 + $0x8] sm:$0xff]
      %v482 = vld [vmem:[%s446 + $0x10] sm:$0xff]
      %v483 = vld [vmem:[%s446 + $0x18] sm:$0xff]
      %v484 = vpack.c.bf16 %v481, %v480
      %v485 = vpack.c.bf16 %v483, %v482
      %v486 = vld [vmem:[%s5] sm:$0xf]
      %v487 = vld [vmem:[%s5 + $0x4] sm:$0x1]
      %v488 = vld [vmem:[%s452] sm:$0xff]
      %v489 = vld [vmem:[%s452 + $0x8] sm:$0xff]
      %v490 = vld [vmem:[%s452 + $0x10] sm:$0xff]
      %v491 = vld [vmem:[%s452 + $0x18] sm:$0xff]
      %v492 = vpack.c.bf16 %v489, %v488
      %v493 = vpack.c.bf16 %v491, %v490
      %s494 = scalar_lea.vmem %s5, 8
      %v495 = vld [vmem:[%s494] sm:$0xf]
      %v496 = vld [vmem:[%s494 + $0x4] sm:$0xf]
      %v499 = vunpack.c.l.b16 %v495
      %v500 = vunpack.c.l.b16 %v496
      %v501 = vpack.c.b16 %v500, %v499
      %vm502 = vcmask 121856
      %v504 = vsel %vm502, %v492, 0
      %v507 = vsel %vm502, %v493, 0
      %vm509 = vcmask 1046528
      %vm510 = vcmask 1047552
      %v511 = vsel %vm509, 4294967295, 65535
      %v512 = vsel %vm510, %v511, 0
      %v514 = vand.u32 %v501, %v512
      %516 = vmatprep.subr.bf16.mxu0 0
      %517 = vmatpush1.bf16.msra.mxu0 %v514
      %518 = vmatprep.subr.bf16.mxu0 0
      %519 = vmatpush1.bf16.msra.mxu0 0
      %520 = vmatprep.subr.bf16.mxu0 0
      %521 = vmatpush1.bf16.msra.mxu0 0
      %522 = vmatprep.subr.bf16.mxu0 0
      %523 = vmatpush1.bf16.msra.mxu0 0
      %524 = vmatprep.subr.bf16.mxu0 0
      %525 = vmatpush1.bf16.msra.mxu0 0
      %526 = vmatprep.subr.bf16.mxu0 0
      %527 = vmatpush1.bf16.msra.mxu0 0
      %528 = vmatprep.subr.bf16.mxu0 0
      %529 = vmatpush1.bf16.msra.mxu0 0
      %530 = vmatprep.subr.bf16.mxu0 0
      %531 = vmatpush1.bf16.msra.mxu0 0
      %532 = vmatprep.subr.bf16.mxu0 0
      %533 = vmatpush1.bf16.msra.mxu0 0
      %534 = vmatprep.subr.bf16.mxu0 0
      %535 = vmatpush1.bf16.msra.mxu0 0
      %536 = vmatprep.subr.bf16.mxu0 0
      %537 = vmatpush1.bf16.msra.mxu0 0
      %538 = vmatprep.subr.bf16.mxu0 0
      %539 = vmatpush1.bf16.msra.mxu0 0
      %540 = vmatprep.subr.bf16.mxu0 0
      %541 = vmatpush1.bf16.msra.mxu0 0
      %542 = vmatprep.subr.bf16.mxu0 0
      %543 = vmatpush1.bf16.msra.mxu0 0
      %544 = vmatprep.subr.bf16.mxu0 0
      %545 = vmatpush1.bf16.msra.mxu0 0
      %546 = vmatprep.subr.bf16.mxu0 0
      %547 = vmatpush1.bf16.msra.mxu0 0
      %548 = vmatprep.mubr.bf16.mxu0 0
      %549 = vmatmul.mubr.bf16.gmra.mrb[0].mxu0 %v504
      %v550 = vpop.f32.mrb[0].mxu0
      %v551 = vadd.f32 0.0, %v550
      %v552 = vpop.f32.mrb[0].mxu0
      %v553 = vpop.f32.mrb[0].mxu0
      %v554 = vadd.f32 0.0, %v553
      %v555 = vpop.f32.mrb[0].mxu0
      %556 = vmatprep.mubr.bf16.mxu0 0
      %557 = vmatmul.mubr.bf16.gmra.mrb[0].mxu0 %v507
      %v558 = vpop.f32.mrb[0].mxu0
      %v559 = vadd.f32 0.0, %v558
      %v560 = vpop.f32.mrb[0].mxu0
      %v561 = vpop.f32.mrb[0].mxu0
      %v562 = vadd.f32 0.0, %v561
      %v563 = vpop.f32.mrb[0].mxu0
      %564 = vdwg.mxu0
      %v567 = vunpack.c.l.b16 %v486
      %v568 = vunpack.c.l.b16 %v487
      %v569 = vpack.c.b16 %v568, %v567
      %vm570 = vcmask 80896
      %v572 = vsel %vm570, %v484, 0
      %v575 = vsel %vm570, %v485, 0
      %vm577 = vcmask 1044480
      %v579 = vsel %vm577, %v569, 0
      %581 = vmatprep.subr.bf16.mxu0 0
      %582 = vmatpush1.bf16.msra.mxu0 %v579
      %583 = vmatprep.subr.bf16.mxu0 0
      %584 = vmatpush1.bf16.msra.mxu0 0
      %585 = vmatprep.subr.bf16.mxu0 0
      %586 = vmatpush1.bf16.msra.mxu0 0
      %587 = vmatprep.subr.bf16.mxu0 0
      %588 = vmatpush1.bf16.msra.mxu0 0
      %589 = vmatprep.subr.bf16.mxu0 0
      %590 = vmatpush1.bf16.msra.mxu0 0
      %591 = vmatprep.subr.bf16.mxu0 0
      %592 = vmatpush1.bf16.msra.mxu0 0
      %593 = vmatprep.subr.bf16.mxu0 0
      %594 = vmatpush1.bf16.msra.mxu0 0
      %595 = vmatprep.subr.bf16.mxu0 0
      %596 = vmatpush1.bf16.msra.mxu0 0
      %597 = vmatprep.subr.bf16.mxu0 0
      %598 = vmatpush1.bf16.msra.mxu0 0
      %599 = vmatprep.subr.bf16.mxu0 0
      %600 = vmatpush1.bf16.msra.mxu0 0
      %601 = vmatprep.subr.bf16.mxu0 0
      %602 = vmatpush1.bf16.msra.mxu0 0
      %603 = vmatprep.subr.bf16.mxu0 0
      %604 = vmatpush1.bf16.msra.mxu0 0
      %605 = vmatprep.subr.bf16.mxu0 0
      %606 = vmatpush1.bf16.msra.mxu0 0
      %607 = vmatprep.subr.bf16.mxu0 0
      %608 = vmatpush1.bf16.msra.mxu0 0
      %609 = vmatprep.subr.bf16.mxu0 0
      %610 = vmatpush1.bf16.msra.mxu0 0
      %611 = vmatprep.subr.bf16.mxu0 0
      %612 = vmatpush1.bf16.msra.mxu0 0
      %613 = vmatprep.mubr.bf16.mxu0 0
      %614 = vmatmul.mubr.bf16.gmra.mrb[0].mxu0 %v572
      %v615 = vpop.f32.mrb[0].mxu0
      %v616 = vadd.f32 %v551, %v615
      %v617 = vpop.f32.mrb[0].mxu0
      %v618 = vpop.f32.mrb[0].mxu0
      %v619 = vadd.f32 %v554, %v618
      %v620 = vpop.f32.mrb[0].mxu0
      %621 = vmatprep.mubr.bf16.mxu0 0
      %622 = vmatmul.mubr.bf16.gmra.mrb[0].mxu0 %v575
      %v623 = vpop.f32.mrb[0].mxu0
      %v624 = vadd.f32 %v559, %v623
      %v625 = vpop.f32.mrb[0].mxu0
      %v626 = vpop.f32.mrb[0].mxu0
      %v627 = vadd.f32 %v562, %v626
      %v628 = vpop.f32.mrb[0].mxu0
      %629 = vdwg.mxu0
      %v630 = vld [vmem:[%s458] sm:$0xff]
      %v631 = vld [vmem:[%s458 + $0x8] sm:$0xff]
      %v632 = vld [vmem:[%s458 + $0x10] sm:$0xff]
      %v633 = vld [vmem:[%s458 + $0x18] sm:$0xff]
      %v634 = vpack.c.bf16 %v631, %v630
      %v635 = vpack.c.bf16 %v633, %v632
      %s636 = scalar_lea.vmem %s5, 16
      %v637 = vld [vmem:[%s636] sm:$0x3]
      %vm638 = vcmask 31744
      %v640 = vsel %vm638, %v634, 0
      %v643 = vsel %vm638, %v635, 0
      %vm645 = vcmask 1041408
      %v647 = vsel %vm645, %v637, 0
      %649 = vmatprep.subr.bf16.mxu0 0
      %650 = vmatpush1.bf16.msra.mxu0 %v647
      %651 = vmatprep.subr.bf16.mxu0 0
      %652 = vmatpush1.bf16.msra.mxu0 0
      %653 = vmatprep.subr.bf16.mxu0 0
      %654 = vmatpush1.bf16.msra.mxu0 0
      %655 = vmatprep.subr.bf16.mxu0 0
      %656 = vmatpush1.bf16.msra.mxu0 0
      %657 = vmatprep.subr.bf16.mxu0 0
      %658 = vmatpush1.bf16.msra.mxu0 0
      %659 = vmatprep.subr.bf16.mxu0 0
      %660 = vmatpush1.bf16.msra.mxu0 0
      %661 = vmatprep.subr.bf16.mxu0 0
      %662 = vmatpush1.bf16.msra.mxu0 0
      %663 = vmatprep.subr.bf16.mxu0 0
      %664 = vmatpush1.bf16.msra.mxu0 0
      %665 = vmatprep.subr.bf16.mxu0 0
      %666 = vmatpush1.bf16.msra.mxu0 0
      %667 = vmatprep.subr.bf16.mxu0 0
      %668 = vmatpush1.bf16.msra.mxu0 0
      %669 = vmatprep.subr.bf16.mxu0 0
      %670 = vmatpush1.bf16.msra.mxu0 0
      %671 = vmatprep.subr.bf16.mxu0 0
      %672 = vmatpush1.bf16.msra.mxu0 0
      %673 = vmatprep.subr.bf16.mxu0 0
      %674 = vmatpush1.bf16.msra.mxu0 0
      %675 = vmatprep.subr.bf16.mxu0 0
      %676 = vmatpush1.bf16.msra.mxu0 0
      %677 = vmatprep.subr.bf16.mxu0 0
      %678 = vmatpush1.bf16.msra.mxu0 0
      %679 = vmatprep.subr.bf16.mxu0 0
      %680 = vmatpush1.bf16.msra.mxu0 0
      %681 = vmatprep.mubr.bf16.mxu0 0
      %682 = vmatmul.mubr.bf16.gmra.mrb[0].mxu0 %v640
      %v683 = vpop.f32.mrb[0].mxu0
      %v684 = vadd.f32 0.0, %v683
      %v685 = vpop.f32.mrb[0].mxu0
      %v686 = vpop.f32.mrb[0].mxu0
      %v687 = vadd.f32 0.0, %v686
      %v688 = vpop.f32.mrb[0].mxu0
      %689 = vmatprep.mubr.bf16.mxu0 0
      %690 = vmatmul.mubr.bf16.gmra.mrb[0].mxu0 %v643
      %v691 = vpop.f32.mrb[0].mxu0
      %v692 = vadd.f32 0.0, %v691
      %v693 = vpop.f32.mrb[0].mxu0
      %v694 = vpop.f32.mrb[0].mxu0
      %v695 = vadd.f32 0.0, %v694
      %v696 = vpop.f32.mrb[0].mxu0
      %697 = vdwg.mxu0
      %v698 = vadd.f32 %v616, %v684
      %v699 = vadd.f32 %v619, %v687
      %v700 = vadd.f32 %v624, %v692
      %v701 = vadd.f32 %v627, %v695
      %v702 = vld [vmem:[%s464] sm:$0xff]
      %v703 = vld [vmem:[%s464 + $0x8] sm:$0xff]
      %v704 = vld [vmem:[%s464 + $0x10] sm:$0xff]
      %v705 = vld [vmem:[%s464 + $0x18] sm:$0xff]
      %v706 = vpack.c.bf16 %v703, %v702
      %v707 = vpack.c.bf16 %v705, %v704
      %s708 = scalar_lea.vmem %s5, 24
      %v709 = vld [vmem:[%s708] sm:$0xf]
      %v710 = vld [vmem:[%s708 + $0x4] sm:$0x1]
      %v713 = vunpack.c.l.b16 %v709
      %v714 = vunpack.c.l.b16 %v710
      %v715 = vpack.c.b16 %v714, %v713
      %v717 = vsel %vm570, %v706, 0
      %v720 = vsel %vm570, %v707, 0
      %v723 = vsel %vm577, %v715, 0
      %725 = vmatprep.subr.bf16.mxu0 0
      %726 = vmatpush1.bf16.msra.mxu0 %v723
      %727 = vmatprep.subr.bf16.mxu0 0
      %728 = vmatpush1.bf16.msra.mxu0 0
      %729 = vmatprep.subr.bf16.mxu0 0
      %730 = vmatpush1.bf16.msra.mxu0 0
      %731 = vmatprep.subr.bf16.mxu0 0
      %732 = vmatpush1.bf16.msra.mxu0 0
      %733 = vmatprep.subr.bf16.mxu0 0
      %734 = vmatpush1.bf16.msra.mxu0 0
      %735 = vmatprep.subr.bf16.mxu0 0
      %736 = vmatpush1.bf16.msra.mxu0 0
      %737 = vmatprep.subr.bf16.mxu0 0
      %738 = vmatpush1.bf16.msra.mxu0 0
      %739 = vmatprep.subr.bf16.mxu0 0
      %740 = vmatpush1.bf16.msra.mxu0 0
      %741 = vmatprep.subr.bf16.mxu0 0
      %742 = vmatpush1.bf16.msra.mxu0 0
      %743 = vmatprep.subr.bf16.mxu0 0
      %744 = vmatpush1.bf16.msra.mxu0 0
      %745 = vmatprep.subr.bf16.mxu0 0
      %746 = vmatpush1.bf16.msra.mxu0 0
      %747 = vmatprep.subr.bf16.mxu0 0
      %748 = vmatpush1.bf16.msra.mxu0 0
      %749 = vmatprep.subr.bf16.mxu0 0
      %750 = vmatpush1.bf16.msra.mxu0 0
      %751 = vmatprep.subr.bf16.mxu0 0
      %752 = vmatpush1.bf16.msra.mxu0 0
      %753 = vmatprep.subr.bf16.mxu0 0
      %754 = vmatpush1.bf16.msra.mxu0 0
      %755 = vmatprep.subr.bf16.mxu0 0
      %756 = vmatpush1.bf16.msra.mxu0 0
      %757 = vmatprep.mubr.bf16.mxu0 0
      %758 = vmatmul.mubr.bf16.gmra.mrb[0].mxu0 %v717
      %v759 = vpop.f32.mrb[0].mxu0
      %v760 = vadd.f32 0.0, %v759
      %v761 = vpop.f32.mrb[0].mxu0
      %v762 = vpop.f32.mrb[0].mxu0
      %v763 = vadd.f32 0.0, %v762
      %v764 = vpop.f32.mrb[0].mxu0
      %765 = vmatprep.mubr.bf16.mxu0 0
      %766 = vmatmul.mubr.bf16.gmra.mrb[0].mxu0 %v720
      %v767 = vpop.f32.mrb[0].mxu0
      %v768 = vadd.f32 0.0, %v767
      %v769 = vpop.f32.mrb[0].mxu0
      %v770 = vpop.f32.mrb[0].mxu0
      %v771 = vadd.f32 0.0, %v770
      %v772 = vpop.f32.mrb[0].mxu0
      %773 = vdwg.mxu0
      %v774 = vadd.f32 %v698, %v760
      %v775 = vadd.f32 %v699, %v763
      %v776 = vadd.f32 %v700, %v768
      %v777 = vadd.f32 %v701, %v771
      %v778 = vld [vmem:[%s470] sm:$0xff]
      %v779 = vld [vmem:[%s470 + $0x8] sm:$0xff]
      %v780 = vld [vmem:[%s470 + $0x10] sm:$0xff]
      %v781 = vld [vmem:[%s470 + $0x18] sm:$0xff]
      %v782 = vpack.c.bf16 %v779, %v778
      %v783 = vpack.c.bf16 %v781, %v780
      %s784 = scalar_lea.vmem %s5, 32
      %v785 = vld [vmem:[%s784] sm:$0x3]
      %vm786 = vcmask 23552
      %v788 = vsel %vm786, %v782, 0
      %v791 = vsel %vm786, %v783, 0
      %vm793 = vcmask 1040384
      %v794 = vsel %vm793, 4294967295, 65535
      %v795 = vsel %vm645, %v794, 0
      %v797 = vand.u32 %v785, %v795
      %799 = vmatprep.subr.bf16.mxu0 0
      %800 = vmatpush1.bf16.msra.mxu0 %v797
      %801 = vmatprep.subr.bf16.mxu0 0
      %802 = vmatpush1.bf16.msra.mxu0 0
      %803 = vmatprep.subr.bf16.mxu0 0
      %804 = vmatpush1.bf16.msra.mxu0 0
      %805 = vmatprep.subr.bf16.mxu0 0
      %806 = vmatpush1.bf16.msra.mxu0 0
      %807 = vmatprep.subr.bf16.mxu0 0
      %808 = vmatpush1.bf16.msra.mxu0 0
      %809 = vmatprep.subr.bf16.mxu0 0
      %810 = vmatpush1.bf16.msra.mxu0 0
      %811 = vmatprep.subr.bf16.mxu0 0
      %812 = vmatpush1.bf16.msra.mxu0 0
      %813 = vmatprep.subr.bf16.mxu0 0
      %814 = vmatpush1.bf16.msra.mxu0 0
      %815 = vmatprep.subr.bf16.mxu0 0
      %816 = vmatpush1.bf16.msra.mxu0 0
      %817 = vmatprep.subr.bf16.mxu0 0
      %818 = vmatpush1.bf16.msra.mxu0 0
      %819 = vmatprep.subr.bf16.mxu0 0
      %820 = vmatpush1.bf16.msra.mxu0 0
      %821 = vmatprep.subr.bf16.mxu0 0
      %822 = vmatpush1.bf16.msra.mxu0 0
      %823 = vmatprep.subr.bf16.mxu0 0
      %824 = vmatpush1.bf16.msra.mxu0 0
      %825 = vmatprep.subr.bf16.mxu0 0
      %826 = vmatpush1.bf16.msra.mxu0 0
      %827 = vmatprep.subr.bf16.mxu0 0
      %828 = vmatpush1.bf16.msra.mxu0 0
      %829 = vmatprep.subr.bf16.mxu0 0
      %830 = vmatpush1.bf16.msra.mxu0 0
      %831 = vmatprep.mubr.bf16.mxu0 0
      %832 = vmatmul.mubr.bf16.gmra.mrb[0].mxu0 %v788
      %v833 = vpop.f32.mrb[0].mxu0
      %v834 = vadd.f32 0.0, %v833
      %v835 = vpop.f32.mrb[0].mxu0
      %v836 = vpop.f32.mrb[0].mxu0
      %v837 = vadd.f32 0.0, %v836
      %v838 = vpop.f32.mrb[0].mxu0
      %839 = vmatprep.mubr.bf16.mxu0 0
      %840 = vmatmul.mubr.bf16.gmra.mrb[0].mxu0 %v791
      %v841 = vpop.f32.mrb[0].mxu0
      %v842 = vadd.f32 0.0, %v841
      %v843 = vpop.f32.mrb[0].mxu0
      %v844 = vpop.f32.mrb[0].mxu0
      %v845 = vadd.f32 0.0, %v844
      %v846 = vpop.f32.mrb[0].mxu0
      %847 = vdwg.mxu0
      %v848 = vadd.f32 %v774, %v834
      %v849 = vadd.f32 %v775, %v837
      %v850 = vadd.f32 %v776, %v842
      %v851 = vadd.f32 %v777, %v845
      %v852 = vlaneseq
      %v853 = vshrl.u32 %v852, 7
      %v854 = vsub.s32 0, %v853
      %v855 = vrot.slane %v479, %v854
      %v856 = vadd.f32 %v848, %v855
      %v857 = vadd.f32 %v849, %v855
      %v858 = vadd.f32 %v850, %v855
      %v859 = vadd.f32 %v851, %v855
      %vm860 = vcmp.gt.f32.partialorder %v856, 0.0
      %vm861 = vcmp.gt.f32.partialorder %v857, 0.0
      %vm862 = vcmp.gt.f32.partialorder %v858, 0.0
      %vm863 = vcmp.gt.f32.partialorder %v859, 0.0
      %v864 = vmin.f32 %v856, 0.0
      %v865 = vmin.f32 %v857, 0.0
      %v866 = vmin.f32 %v858, 0.0
      %v867 = vmin.f32 %v859, 0.0
      %v868 = vmul.f32 %v864, 1.442695
      %v869 = vpow.pop %v868
      %v870 = vmul.f32 %v865, 1.442695
      %v871 = vpow.pop %v870
      %v872 = vmul.f32 %v866, 1.442695
      %v873 = vpow.pop %v872
      %v874 = vmul.f32 %v867, 1.442695
      %v875 = vpow.pop %v874
      %v876 = vsub.f32 %v869, 1.0
      %v877 = vsub.f32 %v871, 1.0
      %v878 = vsub.f32 %v873, 1.0
      %v879 = vsub.f32 %v875, 1.0
      %v880 = vsel %vm860, %v856, %v876
      %v881 = vsel %vm861, %v857, %v877
      %v882 = vsel %vm862, %v858, %v878
      %v883 = vsel %vm863, %v859, %v879
      %v884 = vpack.c.bf16 %v881, %v880
      %v885 = vpack.c.bf16 %v883, %v882
      %v886 = vld [vmem:[%s6] sm:$0xf]
      %v887 = vld [vmem:[%s6 + $0x4] sm:$0xf]
      %v888 = vld [vmem:[%s6 + $0x8] sm:$0xf]
      %v889 = vld [vmem:[%s6 + $0xc] sm:$0xf]
      %v890 = vld [vmem:[%s6 + $0x10] sm:$0xf]
      %v891 = vld [vmem:[%s6 + $0x14] sm:$0x1]
      %v892 = vlaneseq
      %v893 = vshrl.u32 %v892, 7
      %v894 = vsub.s32 1, %v893
      %v895 = vrot.slane %v479, %v894
      %v902 = vunpack.c.l.b16 %v886
      %v903 = vunpack.c.l.b16 %v887
      %v904 = vunpack.c.l.b16 %v888
      %v905 = vunpack.c.l.b16 %v889
      %v906 = vunpack.c.l.b16 %v890
      %v907 = vunpack.c.l.b16 %v891
      %v908 = vpack.c.b16 %v903, %v902
      %v909 = vpack.c.b16 %v905, %v904
      %v910 = vpack.c.b16 %v907, %v906
      %vm913 = vcmask 343040
      %v915 = vsel %vm913, %v884, 0
      %v918 = vsel %vm913, %v885, 0
      %v921 = vsel %vm577, %v910, 0
      %923 = vmatprep.subr.bf16.mxu0 0
      %924 = vmatpush1.bf16.msra.mxu0 %v908
      %925 = vmatprep.subr.bf16.mxu0 0
      %926 = vmatpush1.bf16.msra.mxu0 %v909
      %927 = vmatprep.subr.bf16.mxu0 0
      %928 = vmatpush1.bf16.msra.mxu0 %v921
      %929 = vmatprep.subr.bf16.mxu0 0
      %930 = vmatpush1.bf16.msra.mxu0 0
      %931 = vmatprep.subr.bf16.mxu0 0
      %932 = vmatpush1.bf16.msra.mxu0 0
      %933 = vmatprep.subr.bf16.mxu0 0
      %934 = vmatpush1.bf16.msra.mxu0 0
      %935 = vmatprep.subr.bf16.mxu0 0
      %936 = vmatpush1.bf16.msra.mxu0 0
      %937 = vmatprep.subr.bf16.mxu0 0
      %938 = vmatpush1.bf16.msra.mxu0 0
      %939 = vmatprep.subr.bf16.mxu0 0
      %940 = vmatpush1.bf16.msra.mxu0 0
      %941 = vmatprep.subr.bf16.mxu0 0
      %942 = vmatpush1.bf16.msra.mxu0 0
      %943 = vmatprep.subr.bf16.mxu0 0
      %944 = vmatpush1.bf16.msra.mxu0 0
      %945 = vmatprep.subr.bf16.mxu0 0
      %946 = vmatpush1.bf16.msra.mxu0 0
      %947 = vmatprep.subr.bf16.mxu0 0
      %948 = vmatpush1.bf16.msra.mxu0 0
      %949 = vmatprep.subr.bf16.mxu0 0
      %950 = vmatpush1.bf16.msra.mxu0 0
      %951 = vmatprep.subr.bf16.mxu0 0
      %952 = vmatpush1.bf16.msra.mxu0 0
      %953 = vmatprep.subr.bf16.mxu0 0
      %954 = vmatpush1.bf16.msra.mxu0 0
      %955 = vmatprep.mubr.bf16.mxu0 0
      %956 = vmatmul.mubr.bf16.gmra.mrb[0].mxu0 %v915
      %v957 = vpop.f32.mrb[0].mxu0
      %v958 = vadd.f32 %v895, %v957
      %v959 = vpop.f32.mrb[0].mxu0
      %v960 = vpop.f32.mrb[0].mxu0
      %v961 = vadd.f32 %v895, %v960
      %v962 = vpop.f32.mrb[0].mxu0
      %963 = vmatprep.mubr.bf16.mxu0 0
      %964 = vmatmul.mubr.bf16.gmra.mrb[0].mxu0 %v918
      %v965 = vpop.f32.mrb[0].mxu0
      %v966 = vadd.f32 %v895, %v965
      %v967 = vpop.f32.mrb[0].mxu0
      %v968 = vpop.f32.mrb[0].mxu0
      %v969 = vadd.f32 %v895, %v968
      %v970 = vpop.f32.mrb[0].mxu0
      %971 = vdwg.mxu0
      %v972 = vlaneseq
      %v973 = vand.u32 %v972, 127
      %vm974 = vcmp.lt.s32.totalorder %v973, 32
      %vm975 = vcmp.gt.f32.partialorder %v958, 0.0
      %vm976 = vcmp.gt.f32.partialorder %v961, 0.0
      %vm977 = vcmp.gt.f32.partialorder %v966, 0.0
      %vm978 = vcmp.gt.f32.partialorder %v969, 0.0
      %v979 = vmin.f32 %v958, 0.0
      %v980 = vmin.f32 %v961, 0.0
      %v981 = vmin.f32 %v966, 0.0
      %v982 = vmin.f32 %v969, 0.0
      %v983 = vmul.f32 %v979, 1.442695
      %v984 = vpow.pop %v983
      %v985 = vmul.f32 %v980, 1.442695
      %v986 = vpow.pop %v985
      %v987 = vmul.f32 %v981, 1.442695
      %v988 = vpow.pop %v987
      %v989 = vmul.f32 %v982, 1.442695
      %v990 = vpow.pop %v989
      %v991 = vsub.f32 %v984, 1.0
      %v992 = vsub.f32 %v986, 1.0
      %v993 = vsub.f32 %v988, 1.0
      %v994 = vsub.f32 %v990, 1.0
      %v995 = vsel %vm975, %v958, %v991
      %v996 = vsel %vm976, %v961, %v992
      %v997 = vsel %vm977, %v966, %v993
      %v998 = vsel %vm978, %v969, %v994
      %v999 = vsel %vm974, 1, 0
      %vm1000 = vcmp.eq.s32.totalorder %v999, 1
      %v1001 = vsel %vm1000, %v995, %v958
      %v1002 = vsel %vm1000, %v996, %v961
      %v1003 = vsel %vm1000, %v997, %v966
      %v1004 = vsel %vm1000, %v998, %v969
      %v1005 = vpack.c.bf16 %v1002, %v1001
      %v1006 = vpack.c.bf16 %v1004, %v1003
      %v1007 = vld [vmem:[%s7] sm:$0xf]
      %v1008 = vld [vmem:[%s7 + $0x4] sm:$0xf]
      %v1009 = vld [vmem:[%s7 + $0x8] sm:$0xf]
      %v1010 = vld [vmem:[%s7 + $0xc] sm:$0xf]
      %v1011 = vld [vmem:[%s7 + $0x10] sm:$0xf]
      %v1012 = vld [vmem:[%s7 + $0x14] sm:$0x1]
      %v1013 = vlaneseq
      %v1014 = vshrl.u32 %v1013, 7
      %v1015 = vsub.s32 2, %v1014
      %v1016 = vrot.slane %v479, %v1015
      %v1023 = vunpack.c.l.b16 %v1007
      %v1024 = vunpack.c.l.b16 %v1008
      %v1025 = vunpack.c.l.b16 %v1009
      %v1026 = vunpack.c.l.b16 %v1010
      %v1027 = vunpack.c.l.b16 %v1011
      %v1028 = vunpack.c.l.b16 %v1012
      %v1029 = vpack.c.b16 %v1024, %v1023
      %v1030 = vpack.c.b16 %v1026, %v1025
      %v1031 = vpack.c.b16 %v1028, %v1027
      %v1035 = vsel %vm913, %v1005, 0
      %v1038 = vsel %vm913, %v1006, 0
      %v1041 = vsel %vm577, %v1031, 0
      %1043 = vmatprep.subr.bf16.mxu0 0
      %1044 = vmatpush1.bf16.msra.mxu0 %v1029
      %1045 = vmatprep.subr.bf16.mxu0 0
      %1046 = vmatpush1.bf16.msra.mxu0 %v1030
      %1047 = vmatprep.subr.bf16.mxu0 0
      %1048 = vmatpush1.bf16.msra.mxu0 %v1041
      %1049 = vmatprep.subr.bf16.mxu0 0
      %1050 = vmatpush1.bf16.msra.mxu0 0
      %1051 = vmatprep.subr.bf16.mxu0 0
      %1052 = vmatpush1.bf16.msra.mxu0 0
      %1053 = vmatprep.subr.bf16.mxu0 0
      %1054 = vmatpush1.bf16.msra.mxu0 0
      %1055 = vmatprep.subr.bf16.mxu0 0
      %1056 = vmatpush1.bf16.msra.mxu0 0
      %1057 = vmatprep.subr.bf16.mxu0 0
      %1058 = vmatpush1.bf16.msra.mxu0 0
      %1059 = vmatprep.subr.bf16.mxu0 0
      %1060 = vmatpush1.bf16.msra.mxu0 0
      %1061 = vmatprep.subr.bf16.mxu0 0
      %1062 = vmatpush1.bf16.msra.mxu0 0
      %1063 = vmatprep.subr.bf16.mxu0 0
      %1064 = vmatpush1.bf16.msra.mxu0 0
      %1065 = vmatprep.subr.bf16.mxu0 0
      %1066 = vmatpush1.bf16.msra.mxu0 0
      %1067 = vmatprep.subr.bf16.mxu0 0
      %1068 = vmatpush1.bf16.msra.mxu0 0
      %1069 = vmatprep.subr.bf16.mxu0 0
      %1070 = vmatpush1.bf16.msra.mxu0 0
      %1071 = vmatprep.subr.bf16.mxu0 0
      %1072 = vmatpush1.bf16.msra.mxu0 0
      %1073 = vmatprep.subr.bf16.mxu0 0
      %1074 = vmatpush1.bf16.msra.mxu0 0
      %1075 = vmatprep.mubr.bf16.mxu0 0
      %1076 = vmatmul.mubr.bf16.gmra.mrb[0].mxu0 %v1035
      %v1077 = vpop.f32.mrb[0].mxu0
      %v1078 = vadd.f32 %v1016, %v1077
      %v1079 = vpop.f32.mrb[0].mxu0
      %v1080 = vpop.f32.mrb[0].mxu0
      %v1081 = vadd.f32 %v1016, %v1080
      %v1082 = vpop.f32.mrb[0].mxu0
      %1083 = vmatprep.mubr.bf16.mxu0 0
      %1084 = vmatmul.mubr.bf16.gmra.mrb[0].mxu0 %v1038
      %v1085 = vpop.f32.mrb[0].mxu0
      %v1086 = vadd.f32 %v1016, %v1085
      %v1087 = vpop.f32.mrb[0].mxu0
      %v1088 = vpop.f32.mrb[0].mxu0
      %v1089 = vadd.f32 %v1016, %v1088
      %v1090 = vpop.f32.mrb[0].mxu0
      %1091 = vdwg.mxu0
      %vm1092 = vcmp.gt.f32.partialorder %v1078, 0.0
      %vm1093 = vcmp.gt.f32.partialorder %v1081, 0.0
      %vm1094 = vcmp.gt.f32.partialorder %v1086, 0.0
      %vm1095 = vcmp.gt.f32.partialorder %v1089, 0.0
      %v1096 = vmin.f32 %v1078, 0.0
      %v1097 = vmin.f32 %v1081, 0.0
      %v1098 = vmin.f32 %v1086, 0.0
      %v1099 = vmin.f32 %v1089, 0.0
      %v1100 = vmul.f32 %v1096, 1.442695
      %v1101 = vpow.pop %v1100
      %v1102 = vmul.f32 %v1097, 1.442695
      %v1103 = vpow.pop %v1102
      %v1104 = vmul.f32 %v1098, 1.442695
      %v1105 = vpow.pop %v1104
      %v1106 = vmul.f32 %v1099, 1.442695
      %v1107 = vpow.pop %v1106
      %v1108 = vsub.f32 %v1101, 1.0
      %v1109 = vsub.f32 %v1103, 1.0
      %v1110 = vsub.f32 %v1105, 1.0
      %v1111 = vsub.f32 %v1107, 1.0
      %v1112 = vsel %vm1092, %v1078, %v1108
      %v1113 = vsel %vm1093, %v1081, %v1109
      %v1114 = vsel %vm1094, %v1086, %v1110
      %v1115 = vsel %vm1095, %v1089, %v1111
      %v1116 = vpack.c.bf16 %v1113, %v1112
      %v1117 = vpack.c.bf16 %v1115, %v1114
      %v1118 = vld [vmem:[%s9] sm:$0xf]
      %v1119 = vld [vmem:[%s9 + $0x4] sm:$0xf]
      %v1120 = vld [vmem:[%s9 + $0x8] sm:$0xf]
      %v1121 = vld [vmem:[%s9 + $0xc] sm:$0xf]
      %v1122 = vld [vmem:[%s9 + $0x10] sm:$0xf]
      %v1123 = vld [vmem:[%s9 + $0x14] sm:$0x1]
      %v1124 = vld [vmem:[%s10] sm:$0x1]
      %v1126 = vlaneseq
      %v1127 = vshrl.u32 %v1126, 7
      %v1128 = vsub.s32 0, %v1127
      %v1129 = vrot.slane %v1124, %v1128
      %v1137 = vunpack.c.l.b16 %v1118
      %v1138 = vunpack.c.l.b16 %v1119
      %v1139 = vunpack.c.l.b16 %v1120
      %v1140 = vunpack.c.l.b16 %v1121
      %v1141 = vunpack.c.l.b16 %v1122
      %v1142 = vunpack.c.l.b16 %v1123
      %v1143 = vpack.c.b16 %v1138, %v1137
      %v1144 = vpack.c.b16 %v1140, %v1139
      %v1145 = vpack.c.b16 %v1142, %v1141
      %v1149 = vsel %vm913, %v1116, 0
      %v1152 = vsel %vm913, %v1117, 0
      %v1155 = vsel %vm577, %v1145, 0
      %1157 = vmatprep.subr.bf16.mxu0 0
      %1158 = vmatpush1.bf16.msra.mxu0 %v1143
      %1159 = vmatprep.subr.bf16.mxu0 0
      %1160 = vmatpush1.bf16.msra.mxu0 %v1144
      %1161 = vmatprep.subr.bf16.mxu0 0
      %1162 = vmatpush1.bf16.msra.mxu0 %v1155
      %1163 = vmatprep.subr.bf16.mxu0 0
      %1164 = vmatpush1.bf16.msra.mxu0 0
      %1165 = vmatprep.subr.bf16.mxu0 0
      %1166 = vmatpush1.bf16.msra.mxu0 0
      %1167 = vmatprep.subr.bf16.mxu0 0
      %1168 = vmatpush1.bf16.msra.mxu0 0
      %1169 = vmatprep.subr.bf16.mxu0 0
      %1170 = vmatpush1.bf16.msra.mxu0 0
      %1171 = vmatprep.subr.bf16.mxu0 0
      %1172 = vmatpush1.bf16.msra.mxu0 0
      %1173 = vmatprep.subr.bf16.mxu0 0
      %1174 = vmatpush1.bf16.msra.mxu0 0
      %1175 = vmatprep.subr.bf16.mxu0 0
      %1176 = vmatpush1.bf16.msra.mxu0 0
      %1177 = vmatprep.subr.bf16.mxu0 0
      %1178 = vmatpush1.bf16.msra.mxu0 0
      %1179 = vmatprep.subr.bf16.mxu0 0
      %1180 = vmatpush1.bf16.msra.mxu0 0
      %1181 = vmatprep.subr.bf16.mxu0 0
      %1182 = vmatpush1.bf16.msra.mxu0 0
      %1183 = vmatprep.subr.bf16.mxu0 0
      %1184 = vmatpush1.bf16.msra.mxu0 0
      %1185 = vmatprep.subr.bf16.mxu0 0
      %1186 = vmatpush1.bf16.msra.mxu0 0
      %1187 = vmatprep.subr.bf16.mxu0 0
      %1188 = vmatpush1.bf16.msra.mxu0 0
      %1189 = vmatprep.mubr.bf16.mxu0 0
      %1190 = vmatmul.mubr.bf16.gmra.mrb[0].mxu0 %v1149
      %v1191 = vpop.f32.mrb[0].mxu0
      %v1192 = vadd.f32 %v1129, %v1191
      %v1193 = vpop.f32.mrb[0].mxu0
      %v1194 = vpop.f32.mrb[0].mxu0
      %v1195 = vadd.f32 %v1129, %v1194
      %v1196 = vpop.f32.mrb[0].mxu0
      %1197 = vmatprep.mubr.bf16.mxu0 0
      %1198 = vmatmul.mubr.bf16.gmra.mrb[0].mxu0 %v1152
      %v1199 = vpop.f32.mrb[0].mxu0
      %v1200 = vadd.f32 %v1129, %v1199
      %v1201 = vpop.f32.mrb[0].mxu0
      %v1202 = vpop.f32.mrb[0].mxu0
      %v1203 = vadd.f32 %v1129, %v1202
      %v1204 = vpop.f32.mrb[0].mxu0
      %1205 = vdwg.mxu0
      %vm1206 = vcmask 261120
      %1207 = vst.msk [vmem:[%s476] sm:$0xff] %vm1206, %v1192
      %1208 = vst.msk [vmem:[%s476 + $0x8] sm:$0xff] %vm1206, %v1195
      %1209 = vst.msk [vmem:[%s476 + $0x10] sm:$0xff] %vm1206, %v1200
      %1210 = vst.msk [vmem:[%s476 + $0x18] sm:$0xff] %vm1206, %v1203
      %s1211 = smul.u32 4, %s22
      %p1212 = scmp.lt.s32.totalorder %s1211, 7
      %s1213 = scalar_select %p1212, %s1211, 7
      %s1214 = smul.addr %s1213, 8
      %s1215 = scalar_lea.vmem %s11, %s1214
      // Predicated region
      $region65: #{tpu_custom_call.1} parent=63 // pred_check
        %p1216 = pneg %p296
      $region66: #{tpu_custom_call.1} parent=63 // pred_check_branch
        %1218 = sbr.rel (%p1216) target = $region68
      $region67: #{tpu_custom_call.1} parent=63 // pred_region
        %s1219 = smul.u32 4, %s22
      $region68: #{tpu_custom_call.1} parent=63 // pred_fallthru
        _
    $region64: #{tpu_custom_call.1} parent=5 // pred_fallthru
      _
    %p1220 = scmp.le.s32.totalorder 2, %s17
    // Predicated region
    $region69: #{tpu_custom_call.1} parent=5 // pred_check
      %p1221 = pneg %p1220
    $region70: #{tpu_custom_call.1} parent=5 // pred_check_branch
      %1223 = sbr.rel (%p1221) target = $region72
    $region71: #{tpu_custom_call.1} parent=5 // pred_region
      %s1224 = ssub.s32 %s17, 2
      // Predicated region
      $region73: #{tpu_custom_call.1} parent=71 // pred_check
        %p1225 = pneg %p302
      $region74: #{tpu_custom_call.1} parent=71 // pred_check_branch
        %1227 = sbr.rel (%p1225) target = $region76
      $region75: #{tpu_custom_call.1} parent=71 // pred_region
        %s1228 = smul.u32 4, %s23
        %p1229 = scmp.lt.s32.totalorder %s1228, 7
        %s1230 = scalar_select %p1229, %s1228, 7
        %s1231 = smul.addr %s1230, 8
        %s1232 = scalar_lea.vmem %s11, %s1231
      $region76: #{tpu_custom_call.1} parent=71 // pred_fallthru
        _
    $region72: #{tpu_custom_call.1} parent=5 // pred_fallthru
      _
  $region6: #{tpu_custom_call.1} parent=0 // loop_footer
    %s21 = sadd.s32 1, %s17
  $region7: #{tpu_custom_call.1} parent=0 // loop_footer_branch
    %16 = sbr.rel target = $region3
  $region8: #{tpu_custom_call.1} parent=0 // loop_exit
    _

</llo_original>
